<compile_context>
chip_gen: v6e
topology: v6e:2x2x1
jax: 0.10.0
libtpu: 0.0.40
codegen_flags: <defaults>
</compile_context>

<pallas_src>
import math
from functools import partial

import jax
import jax.numpy as jnp
from jax import lax
from jax.experimental import pallas as pl
from jax.experimental.pallas import tpu as pltpu

_INV_SQRT2 = 1.0 / math.sqrt(2.0)
_WEIGHT_RESIDENT_BYTES = 8 * 2 ** 20     # weights up to 8 MiB bf16 stay VMEM-resident
_VMEM_LIMIT = 48 * 2 ** 20               # fits v7x (64 MiB phys); ample on v5e/v6e


# ------------------------------ tiling helper -------------------------------

def _pick_tile(dim, target, align):
    """Largest tile <= target that is a multiple of `align` and divides `dim`.
    Falls back to the full dimension (always legal: block == array dim)."""
    if dim <= target:
        return dim
    t = (target // align) * align
    while t >= align:
        if dim % t == 0:
            return t
        t -= align
    return dim


# ----------------------------- Pallas kernels -------------------------------

def _gelu(y):
    return 0.5 * y * (1.0 + lax.erf(y * _INV_SQRT2))


def _ln_core(x, g, b):
    mean = jnp.mean(x, axis=-1, keepdims=True)
    var = jnp.mean(jnp.square(x - mean), axis=-1, keepdims=True)
    return (x - mean) * lax.rsqrt(var + 1e-12) * g + b


def _linear_resident_kernel(x_ref, w_ref, b_ref, o_ref, *, activation):
    """Weight-resident o = act(x @ w + b); full K and full N per grid step."""
    y = jnp.dot(x_ref[...], w_ref[...], preferred_element_type=jnp.float32)
    y = y + b_ref[...]
    if activation == "gelu":
        y = _gelu(y)
    o_ref[...] = y.astype(o_ref.dtype)


def _linear_resident_ln_kernel(x_ref, w_ref, b_ref, r_ref, g_ref, bb_ref, o_ref,
                               *, activation):
    """Weight-resident o = LayerNorm(act(x @ w + b) + residual)."""
    y = jnp.dot(x_ref[...], w_ref[...], preferred_element_type=jnp.float32)
    y = y + b_ref[...]
    if activation == "gelu":
        y = _gelu(y)
    y = y + r_ref[...].astype(jnp.float32)
    o_ref[...] = _ln_core(y, g_ref[...], bb_ref[...]).astype(o_ref.dtype)


def _matmul_kernel(x_ref, w_ref, b_ref, o_ref, acc_ref, *, activation):
    """K-tiled fallback o = act(x @ w + b). K is the last grid axis."""
    @pl.when(pl.program_id(2) == 0)
    def _init():
        acc_ref[...] = jnp.zeros_like(acc_ref)

    acc_ref[...] += jnp.dot(x_ref[...], w_ref[...],
                            preferred_element_type=jnp.float32)

    @pl.when(pl.program_id(2) == pl.num_programs(2) - 1)
    def _finalize():
        y = acc_ref[...] + b_ref[...]
        if activation == "gelu":
            y = _gelu(y)
        o_ref[...] = y.astype(o_ref.dtype)


def _layernorm_kernel(x_ref, g_ref, b_ref, o_ref):
    x = x_ref[...].astype(jnp.float32)
    o_ref[...] = _ln_core(x, g_ref[...], b_ref[...]).astype(o_ref.dtype)


def _add_layernorm_kernel(x_ref, r_ref, g_ref, b_ref, o_ref):
    x = x_ref[...].astype(jnp.float32) + r_ref[...].astype(jnp.float32)
    o_ref[...] = _ln_core(x, g_ref[...], b_ref[...]).astype(o_ref.dtype)


def _attention_kernel(q_ref, k_ref, v_ref, bias_ref, o_ref, *,
                      heads_per_group, d_head, scale):
    """One (batch, head-group) cell.  q/k/v refs are (S, Dg) 128-lane column
    views of the fused QKV activation.  Per-head ctx is concatenated to a
    lane-dense (S, Dg) block before a single aligned store."""
    bias = bias_ref[...]                                   # (1, S) key-pos mask
    ctxs = []
    for h in range(heads_per_group):
        c0, c1 = h * d_head, (h + 1) * d_head
        # pre-scale q: S*Dh multiplies instead of S*S after the matmul
        q = (q_ref[:, c0:c1] * scale).astype(jnp.bfloat16)
        k = k_ref[:, c0:c1]
        v = v_ref[:, c0:c1]
        # contract on last dims -> no explicit K transpose (MXU-native layout)
        s = lax.dot_general(q, k, (((1,), (1,)), ((), ())),
                            preferred_element_type=jnp.float32)
        s = s + bias
        s = s - jnp.max(s, axis=-1, keepdims=True)
        p = jnp.exp(s)
        p = p * pl.reciprocal(jnp.sum(p, axis=-1, keepdims=True), approx=True)
        ctx = jnp.dot(p.astype(jnp.bfloat16), v,
                      preferred_element_type=jnp.float32)
        ctxs.append(ctx)
    out = ctxs[0] if len(ctxs) == 1 else jnp.concatenate(ctxs, axis=-1)
    o_ref[...] = out.astype(o_ref.dtype)
    # TODO(synk): for S >= 1024 switch to flash-style KV tiling (online softmax)
    #             to avoid materializing (S, S) f32 scores per head.


# ----------------------------- kernel wrappers -------------------------------

def _linear_ktiled(x, w, b2, activation, *, tm=512, tn=512, tk=512):
    """K-tiled fallback for weights too large to keep resident in VMEM."""
    N, Din = x.shape
    Dout = w.shape[1]
    bm = _pick_tile(N, tm, 16)
    bn = _pick_tile(Dout, tn, 128)
    bk = _pick_tile(Din, tk, 128)
    grid = (N // bm, Dout // bn, Din // bk)
    return pl.pallas_call(
        partial(_matmul_kernel, activation=activation),
        out_shape=jax.ShapeDtypeStruct((N, Dout), jnp.bfloat16),
        grid=grid,
        in_specs=[pl.BlockSpec((bm, bk), lambda i, j, k: (i, k)),
                  pl.BlockSpec((bk, bn), lambda i, j, k: (k, j)),
                  pl.BlockSpec((1, bn), lambda i, j, k: (0, j))],
        out_specs=pl.BlockSpec((bm, bn), lambda i, j, k: (i, j)),
        scratch_shapes=[pltpu.VMEM((bm, bn), jnp.float32)],
        compiler_params=pltpu.CompilerParams(
            dimension_semantics=("parallel", "parallel", "arbitrary"),
            vmem_limit_bytes=_VMEM_LIMIT),
    )(x, w, b2)


def linear(x, w, b, activation=None, residual=None, gamma=None, beta=None):
    """y = act(x @ w + b); optionally fused y = LayerNorm(y + residual).

    Weight-resident path (weight <= 8 MiB bf16): grid = (N/bm,), the weight
    block index is constant so it is read from HBM once and activations are
    streamed exactly once.  bm is capped at 256 for very wide outputs so the
    per-step footprint stays within v7x's VMEM."""
    N, Din = x.shape
    Dout = w.shape[1]
    fuse_ln = gamma is not None

    x = x.astype(jnp.bfloat16)
    w = w.astype(jnp.bfloat16)
    b2 = b.reshape(1, Dout).astype(jnp.float32)

    resident = Din * Dout * 2 <= _WEIGHT_RESIDENT_BYTES
    if resident:
        tm_target = 256 if Dout >= 2048 else 512
        bm = _pick_tile(N, tm_target, 16)
        in_specs = [pl.BlockSpec((bm, Din), lambda i: (i, 0)),
                    pl.BlockSpec((Din, Dout), lambda i: (0, 0)),   # resident
                    pl.BlockSpec((1, Dout), lambda i: (0, 0))]
        args = [x, w, b2]
        if fuse_ln:
            in_specs += [pl.BlockSpec((bm, Dout), lambda i: (i, 0)),
                         pl.BlockSpec((1, Dout), lambda i: (0, 0)),
                         pl.BlockSpec((1, Dout), lambda i: (0, 0))]
            args += [residual.astype(jnp.bfloat16),
                     gamma.reshape(1, Dout).astype(jnp.float32),
                     beta.reshape(1, Dout).astype(jnp.float32)]
            kernel = partial(_linear_resident_ln_kernel, activation=activation)
        else:
            kernel = partial(_linear_resident_kernel, activation=activation)
        return pl.pallas_call(
            kernel,
            out_shape=jax.ShapeDtypeStruct((N, Dout), jnp.bfloat16),
            grid=(N // bm,),
            in_specs=in_specs,
            out_specs=pl.BlockSpec((bm, Dout), lambda i: (i, 0)),
            compiler_params=pltpu.CompilerParams(
                dimension_semantics=("parallel",),
                vmem_limit_bytes=_VMEM_LIMIT),
        )(*args)

    # oversized weight: K-tiled matmul, LN (if requested) as a separate kernel
    y = _linear_ktiled(x, w, b2, activation)
    if fuse_ln:
        y = add_layernorm(y, residual, gamma, beta)
    return y


def layernorm(x, gamma, beta, *, tm=1024):
    """Row-tiled LayerNorm (no residual) -> bf16."""
    N, H = x.shape
    bm = _pick_tile(N, tm, 16)
    return pl.pallas_call(
        _layernorm_kernel,
        out_shape=jax.ShapeDtypeStruct((N, H), jnp.bfloat16),
        grid=(N // bm,),
        in_specs=[pl.BlockSpec((bm, H), lambda i: (i, 0)),
                  pl.BlockSpec((1, H), lambda i: (0, 0)),
                  pl.BlockSpec((1, H), lambda i: (0, 0))],
        out_specs=pl.BlockSpec((bm, H), lambda i: (i, 0)),
        compiler_params=pltpu.CompilerParams(dimension_semantics=("parallel",)),
    )(x, gamma.reshape(1, H).astype(jnp.float32),
      beta.reshape(1, H).astype(jnp.float32))


def add_layernorm(x, res, gamma, beta, *, tm=1024):
    """Row-tiled LayerNorm(x + res) -> bf16 (fallback when not fused into matmul)."""
    N, H = x.shape
    bm = _pick_tile(N, tm, 16)
    return pl.pallas_call(
        _add_layernorm_kernel,
        out_shape=jax.ShapeDtypeStruct((N, H), jnp.bfloat16),
        grid=(N // bm,),
        in_specs=[pl.BlockSpec((bm, H), lambda i: (i, 0)),
                  pl.BlockSpec((bm, H), lambda i: (i, 0)),
                  pl.BlockSpec((1, H), lambda i: (0, 0)),
                  pl.BlockSpec((1, H), lambda i: (0, 0))],
        out_specs=pl.BlockSpec((bm, H), lambda i: (i, 0)),
        compiler_params=pltpu.CompilerParams(dimension_semantics=("parallel",)),
    )(x, res, gamma.reshape(1, H).astype(jnp.float32),
      beta.reshape(1, H).astype(jnp.float32))


def multi_head_attention(qkv, mask_bias, B, S, n_heads, d_head):
    """qkv: (B*S, 3H) fused projection; mask_bias: (B, 1, S) additive key mask.
    Returns (B*S, H) bf16.  Heads are processed in 128-lane groups, head-group
    is a grid axis, and q/k/v slices are pure BlockSpec column addressing of
    the fused QKV activation (no HBM transposes / slices materialized)."""
    H = n_heads * d_head
    N = B * S
    scale = 1.0 / math.sqrt(d_head)

    # group heads so a group spans exactly 128 lanes when possible
    if d_head % 128 == 0:
        hpg = 1
    elif (2 * d_head) % 128 == 0 and n_heads % 2 == 0:
        hpg = 2
    else:
        hpg = n_heads
    G = n_heads // hpg
    Dg = hpg * d_head

    off_q, off_k, off_v = 0, H // Dg, (2 * H) // Dg

    def qkv_view(off):
        return pl.BlockSpec((S, Dg), lambda b, g, off=off: (b, off + g))

    return pl.pallas_call(
        partial(_attention_kernel, heads_per_group=hpg, d_head=d_head,
                scale=scale),
        out_shape=jax.ShapeDtypeStruct((N, H), jnp.bfloat16),
        grid=(B, G),
        in_specs=[qkv_view(off_q), qkv_view(off_k), qkv_view(off_v),
                  pl.BlockSpec((None, 1, S), lambda b, g: (b, 0, 0))],
        out_specs=pl.BlockSpec((S, Dg), lambda b, g: (b, g)),
        compiler_params=pltpu.CompilerParams(
            dimension_semantics=("parallel", "parallel"),
            vmem_limit_bytes=_VMEM_LIMIT),
    )(qkv, qkv, qkv, mask_bias)


# ----------------------------- model definition ------------------------------

def init_params(key, cfg):
    H, F, V, P, L, C = (cfg["hidden"], cfg["ffn"], cfg["vocab"],
                        cfg["max_pos"], cfg["layers"], cfg["n_classes"])
    std = 0.02
    keys = iter(jax.random.split(key, 8 + 8 * L))

    def w(shape, dtype=jnp.bfloat16):
        return (std * jax.random.normal(next(keys), shape)).astype(dtype)

    params = {
        "emb": {
            "word": w((V, H), jnp.float32), "pos": w((P, H), jnp.float32),
            "type": w((2, H), jnp.float32),
            "ln_g": jnp.ones((H,), jnp.float32),
            "ln_b": jnp.zeros((H,), jnp.float32),
        },
        "layers": [],
        # classifier kept in f32, applied in plain JAX (Dout=2 is launch-bound)
        "cls_w": w((H, C), jnp.float32), "cls_b": jnp.zeros((C,), jnp.float32),
    }
    for _ in range(L):
        params["layers"].append({
            "wqkv": w((H, 3 * H)), "bqkv": jnp.zeros((3 * H,), jnp.float32),
            "wo": w((H, H)), "bo": jnp.zeros((H,), jnp.float32),
            "ln1_g": jnp.ones((H,), jnp.float32), "ln1_b": jnp.zeros((H,), jnp.float32),
            "w1": w((H, F)), "b1": jnp.zeros((F,), jnp.float32),
            "w2": w((F, H)), "b2": jnp.zeros((H,), jnp.float32),
            "ln2_g": jnp.ones((H,), jnp.float32), "ln2_b": jnp.zeros((H,), jnp.float32),
        })
    return params


def bert_classifier_forward(params, input_ids, attention_mask, cfg):
    """Mirrors BertClassifier.forward: logits = Linear(bert(...)[0][:, 0, :])."""
    B, S = input_ids.shape
    H, nH = cfg["hidden"], cfg["heads"]
    Dh = H // nH

    # --- embeddings (gathers are glue; LN streams bf16, computes in f32) ---
    emb = params["emb"]
    x = (emb["word"][input_ids]
         + emb["pos"][jnp.arange(S)][None, :, :]
         + emb["type"][0][None, None, :])     # TODO(synk): token_type_ids assumed all-zero
    x = x.reshape(B * S, H).astype(jnp.bfloat16)
    x = layernorm(x, emb["ln_g"], emb["ln_b"])          # -> bf16 (N, H)
    # nn.Dropout -> identity (inference / eval mode)

    # HF-style additive attention mask: (1 - mask) * -10000, broadcast over queries
    mask_bias = ((1.0 - attention_mask.astype(jnp.float32)) * -10000.0
                 ).reshape(B, 1, S)

    for layer in params["layers"]:
        # --- self-attention block (fused QKV projection) ---
        qkv = linear(x, layer["wqkv"], layer["bqkv"])                 # (N, 3H)
        ctx = multi_head_attention(qkv, mask_bias, B, S, nH, Dh)      # (N, H)
        # output projection with fused residual-add + LayerNorm
        x = linear(ctx, layer["wo"], layer["bo"],
                   residual=x, gamma=layer["ln1_g"], beta=layer["ln1_b"])

        # --- feed-forward block ---
        h = linear(x, layer["w1"], layer["b1"], activation="gelu")
        # down-projection with fused residual-add + LayerNorm
        x = linear(h, layer["w2"], layer["b2"],
                   residual=x, gamma=layer["ln2_g"], beta=layer["ln2_b"])

    # outputs[0][:, 0, :]  ([CLS] token of last_hidden_state)
    cls = x.reshape(B, S, H)[:, 0, :].astype(jnp.float32)
    # nn.Dropout -> identity (eval); classifier Linear(H -> 2) in plain JAX
    logits = cls @ params["cls_w"] + params["cls_b"]
    return logits


# ---------------------------------- main -------------------------------------

if __name__ == "__main__":
    # Small, lane-aligned demo shapes (hidden=128 keeps blocks 128-lane dense).
    cfg = dict(vocab=100, hidden=128, heads=2, layers=2, ffn=256,
               max_pos=16, n_classes=2)
    B, S = 2, 8

    key = jax.random.PRNGKey(0)
    pkey, ikey = jax.random.split(key)
    params = init_params(pkey, cfg)

    input_ids = jax.random.randint(ikey, (B, S), 0, cfg["vocab"], dtype=jnp.int32)
    # second sequence padded for the last 2 positions
    attention_mask = jnp.ones((B, S), dtype=jnp.int32).at[1, 6:].set(0)

    fwd = jax.jit(partial(bert_classifier_forward, cfg=cfg))
    logits = jax.block_until_ready(fwd(params, input_ids, attention_mask))

    assert logits.shape == (B, cfg["n_classes"])
    assert bool(jnp.all(jnp.isfinite(logits)))
    print("KERNEL_OK")
</pallas_src>

<mosaic_0001>
module attributes {stable_mosaic.version = 11 : i64} {
  func.func @_layernorm_kernel(%arg0: i32, %arg1: memref<16x128xbf16, #tpu.memory_space<vmem>>, %arg2: memref<1x128xf32, #tpu.memory_space<vmem>>, %arg3: memref<1x128xf32, #tpu.memory_space<vmem>>, %arg4: memref<16x128xbf16, #tpu.memory_space<vmem>>) attributes {dimension_semantics = [#tpu.dimension_semantics<parallel>], iteration_bounds = array<i64: 1>, scalar_prefetch = 0 : i64, scratch_operands = 0 : i64, tpu.core_type = #tpu.core_type<tc>, window_params = [{transform_indices = @transform_0, window_bounds = array<i64: 16, 128>}, {pipeline_mode = #tpu.pipeline_mode<synchronous>, transform_indices = @transform_1, window_bounds = array<i64: 1, 128>}, {pipeline_mode = #tpu.pipeline_mode<synchronous>, transform_indices = @transform_2, window_bounds = array<i64: 1, 128>}, {transform_indices = @transform_3, window_bounds = array<i64: 16, 128>}]} {
    %c0 = arith.constant 0 : index
    %c0_0 = arith.constant 0 : index
    %0 = vector.load %arg1[%c0, %c0_0] : memref<16x128xbf16, #tpu.memory_space<vmem>>, vector<16x128xbf16>
    %1 = arith.extf %0 : vector<16x128xbf16> to vector<16x128xf32>
    %c0_1 = arith.constant 0 : index
    %c0_2 = arith.constant 0 : index
    %2 = vector.load %arg2[%c0_1, %c0_2] : memref<1x128xf32, #tpu.memory_space<vmem>>, vector<1x128xf32>
    %c0_3 = arith.constant 0 : index
    %c0_4 = arith.constant 0 : index
    %3 = vector.load %arg3[%c0_3, %c0_4] : memref<1x128xf32, #tpu.memory_space<vmem>>, vector<1x128xf32>
    %cst = arith.constant dense<0.000000e+00> : vector<16xf32>
    %4 = vector.multi_reduction <add>, %1, %cst [1] : vector<16x128xf32> to vector<16xf32>
    %5 = vector.shape_cast %4 : vector<16xf32> to vector<16x1xf32>
    %cst_5 = arith.constant 1.280000e+02 : f32
    %6 = vector.broadcast %cst_5 : f32 to vector<16x1xf32>
    %7 = arith.divf %5, %6 : vector<16x1xf32>
    %8 = vector.broadcast %7 : vector<16x1xf32> to vector<16x128xf32>
    %9 = arith.subf %1, %8 : vector<16x128xf32>
    %10 = arith.mulf %9, %9 : vector<16x128xf32>
    %cst_6 = arith.constant dense<0.000000e+00> : vector<16xf32>
    %11 = vector.multi_reduction <add>, %10, %cst_6 [1] : vector<16x128xf32> to vector<16xf32>
    %12 = vector.shape_cast %11 : vector<16xf32> to vector<16x1xf32>
    %cst_7 = arith.constant 1.280000e+02 : f32
    %13 = vector.broadcast %cst_7 : f32 to vector<16x1xf32>
    %14 = arith.divf %12, %13 : vector<16x1xf32>
    %15 = vector.broadcast %7 : vector<16x1xf32> to vector<16x128xf32>
    %16 = arith.subf %1, %15 : vector<16x128xf32>
    %cst_8 = arith.constant 9.99999996E-13 : f32
    %17 = vector.broadcast %cst_8 : f32 to vector<16x1xf32>
    %18 = arith.addf %14, %17 : vector<16x1xf32>
    %19 = math.rsqrt %18 : vector<16x1xf32>
    %20 = vector.broadcast %19 : vector<16x1xf32> to vector<16x128xf32>
    %21 = arith.mulf %16, %20 : vector<16x128xf32>
    %22 = vector.broadcast %2 : vector<1x128xf32> to vector<16x128xf32>
    %23 = arith.mulf %21, %22 : vector<16x128xf32>
    %24 = vector.broadcast %3 : vector<1x128xf32> to vector<16x128xf32>
    %25 = arith.addf %23, %24 : vector<16x128xf32>
    %26 = arith.truncf %25 : vector<16x128xf32> to vector<16x128xbf16>
    %c0_9 = arith.constant 0 : index
    %c0_10 = arith.constant 0 : index
    %27 = vector.load %arg4[%c0_9, %c0_10] : memref<16x128xbf16, #tpu.memory_space<vmem>>, vector<16x128xbf16>
    tpu.vector_store %arg4[%c0_9, %c0_10], %26 {strides = array<i32>} : memref<16x128xbf16, #tpu.memory_space<vmem>>, vector<16x128xbf16>,
    return
  }
  func.func @transform_0(%arg0: i32) -> (i32, i32) {
    %c0_i32 = arith.constant 0 : i32
    %c0_i32_0 = arith.constant 0 : i32
    return %arg0, %c0_i32 : i32, i32
  }
  func.func @transform_1(%arg0: i32) -> (i32, i32) {
    %c0_i32 = arith.constant 0 : i32
    %c0_i32_0 = arith.constant 0 : i32
    %c0_i32_1 = arith.constant 0 : i32
    return %c0_i32, %c0_i32_0 : i32, i32
  }
  func.func @transform_2(%arg0: i32) -> (i32, i32) {
    %c0_i32 = arith.constant 0 : i32
    %c0_i32_0 = arith.constant 0 : i32
    %c0_i32_1 = arith.constant 0 : i32
    return %c0_i32, %c0_i32_0 : i32, i32
  }
  func.func @transform_3(%arg0: i32) -> (i32, i32) {
    %c0_i32 = arith.constant 0 : i32
    %c0_i32_0 = arith.constant 0 : i32
    return %arg0, %c0_i32 : i32, i32
  }
}

module attributes {stable_mosaic.version = 11 : i64} {
  func.func @_attention_kernel(%arg0: i32, %arg1: i32, %arg2: memref<8x128xbf16, #tpu.memory_space<vmem>>, %arg3: memref<8x128xbf16, #tpu.memory_space<vmem>>, %arg4: memref<8x128xbf16, #tpu.memory_space<vmem>>, %arg5: memref<1x1x8xf32, #tpu.memory_space<vmem>>, %arg6: memref<8x128xbf16, #tpu.memory_space<vmem>>) attributes {dimension_semantics = [#tpu.dimension_semantics<parallel>, #tpu.dimension_semantics<parallel>], iteration_bounds = array<i64: 2, 1>, scalar_prefetch = 0 : i64, scratch_operands = 0 : i64, tpu.core_type = #tpu.core_type<tc>, window_params = [{transform_indices = @transform_0, window_bounds = array<i64: 8, 128>}, {transform_indices = @transform_1, window_bounds = array<i64: 8, 128>}, {transform_indices = @transform_2, window_bounds = array<i64: 8, 128>}, {transform_indices = @transform_3, window_bounds = array<i64: 1, 1, 8>}, {transform_indices = @transform_4, window_bounds = array<i64: 8, 128>}]} {
    %c0 = arith.constant 0 : index
    %c0_0 = arith.constant 0 : index
    %c0_1 = arith.constant 0 : index
    %0 = vector.load %arg5[%c0, %c0_0, %c0_1] : memref<1x1x8xf32, #tpu.memory_space<vmem>>, vector<1x1x8xf32>
    %1 = vector.shape_cast %0 : vector<1x1x8xf32> to vector<1x8xf32>
    %c0_2 = arith.constant 0 : index
    %c0_3 = arith.constant 0 : index
    %2 = vector.load %arg2[%c0_2, %c0_3] : memref<8x128xbf16, #tpu.memory_space<vmem>>, vector<8x64xbf16>
    %cst = arith.constant 1.250000e-01 : bf16
    %3 = vector.broadcast %cst : bf16 to vector<8x64xbf16>
    %4 = arith.mulf %2, %3 : vector<8x64xbf16>
    %c0_4 = arith.constant 0 : index
    %c0_5 = arith.constant 0 : index
    %5 = vector.load %arg3[%c0_4, %c0_5] : memref<8x128xbf16, #tpu.memory_space<vmem>>, vector<8x64xbf16>
    %c0_6 = arith.constant 0 : index
    %c0_7 = arith.constant 0 : index
    %6 = vector.load %arg4[%c0_6, %c0_7] : memref<8x128xbf16, #tpu.memory_space<vmem>>, vector<8x64xbf16>
    %cst_8 = arith.constant dense<0.000000e+00> : vector<8x8xf32>
    %7 = tpu.matmul %4, %5, %cst_8 {dimension_numbers = #tpu.dot_dimension_numbers<[1], [1], [0], [0], [0, 0, 1, 0], [], []>} : vector<8x64xbf16>, vector<8x64xbf16>, vector<8x8xf32> -> vector<8x8xf32>
    %8 = vector.broadcast %1 : vector<1x8xf32> to vector<8x8xf32>
    %9 = arith.addf %7, %8 : vector<8x8xf32>
    %cst_9 = arith.constant dense<0xFF800000> : vector<8xf32>
    %10 = vector.multi_reduction <maximumf>, %9, %cst_9 [1] : vector<8x8xf32> to vector<8xf32>
    %11 = vector.shape_cast %10 : vector<8xf32> to vector<8x1xf32>
    %12 = vector.broadcast %11 : vector<8x1xf32> to vector<8x8xf32>
    %13 = arith.subf %9, %12 : vector<8x8xf32>
    %14 = math.exp %13 : vector<8x8xf32>
    %cst_10 = arith.constant dense<0.000000e+00> : vector<8xf32>
    %15 = vector.multi_reduction <add>, %14, %cst_10 [1] : vector<8x8xf32> to vector<8xf32>
    %16 = vector.shape_cast %15 : vector<8xf32> to vector<8x1xf32>
    %17 = tpu.reciprocal %16 {approx = true} : vector<8x1xf32> -> vector<8x1xf32>
    %18 = vector.broadcast %17 : vector<8x1xf32> to vector<8x8xf32>
    %19 = arith.mulf %14, %18 : vector<8x8xf32>
    %20 = arith.truncf %19 : vector<8x8xf32> to vector<8x8xbf16>
    %cst_11 = arith.constant dense<0.000000e+00> : vector<8x64xf32>
    %21 = tpu.matmul %20, %6, %cst_11 {dimension_numbers = #tpu.dot_dimension_numbers<[1], [0], [0], [1], [0, 0, 1, 1], [], []>} : vector<8x8xbf16>, vector<8x64xbf16>, vector<8x64xf32> -> vector<8x64xf32>
    %c0_12 = arith.constant 0 : index
    %c64 = arith.constant 64 : index
    %22 = vector.load %arg2[%c0_12, %c64] : memref<8x128xbf16, #tpu.memory_space<vmem>>, vector<8x64xbf16>
    %cst_13 = arith.constant 1.250000e-01 : bf16
    %23 = vector.broadcast %cst_13 : bf16 to vector<8x64xbf16>
    %24 = arith.mulf %22, %23 : vector<8x64xbf16>
    %c0_14 = arith.constant 0 : index
    %c64_15 = arith.constant 64 : index
    %25 = vector.load %arg3[%c0_14, %c64_15] : memref<8x128xbf16, #tpu.memory_space<vmem>>, vector<8x64xbf16>
    %c0_16 = arith.constant 0 : index
    %c64_17 = arith.constant 64 : index
    %26 = vector.load %arg4[%c0_16, %c64_17] : memref<8x128xbf16, #tpu.memory_space<vmem>>, vector<8x64xbf16>
    %cst_18 = arith.constant dense<0.000000e+00> : vector<8x8xf32>
    %27 = tpu.matmul %24, %25, %cst_18 {dimension_numbers = #tpu.dot_dimension_numbers<[1], [1], [0], [0], [0, 0, 1, 0], [], []>} : vector<8x64xbf16>, vector<8x64xbf16>, vector<8x8xf32> -> vector<8x8xf32>
    %28 = vector.broadcast %1 : vector<1x8xf32> to vector<8x8xf32>
    %29 = arith.addf %27, %28 : vector<8x8xf32>
    %cst_19 = arith.constant dense<0xFF800000> : vector<8xf32>
    %30 = vector.multi_reduction <maximumf>, %29, %cst_19 [1] : vector<8x8xf32> to vector<8xf32>
    %31 = vector.shape_cast %30 : vector<8xf32> to vector<8x1xf32>
    %32 = vector.broadcast %31 : vector<8x1xf32> to vector<8x8xf32>
    %33 = arith.subf %29, %32 : vector<8x8xf32>
    %34 = math.exp %33 : vector<8x8xf32>
    %cst_20 = arith.constant dense<0.000000e+00> : vector<8xf32>
    %35 = vector.multi_reduction <add>, %34, %cst_20 [1] : vector<8x8xf32> to vector<8xf32>
    %36 = vector.shape_cast %35 : vector<8xf32> to vector<8x1xf32>
    %37 = tpu.reciprocal %36 {approx = true} : vector<8x1xf32> -> vector<8x1xf32>
    %38 = vector.broadcast %37 : vector<8x1xf32> to vector<8x8xf32>
    %39 = arith.mulf %34, %38 : vector<8x8xf32>
    %40 = arith.truncf %39 : vector<8x8xf32> to vector<8x8xbf16>
    %cst_21 = arith.constant dense<0.000000e+00> : vector<8x64xf32>
    %41 = tpu.matmul %40, %26, %cst_21 {dimension_numbers = #tpu.dot_dimension_numbers<[1], [0], [0], [1], [0, 0, 1, 1], [], []>} : vector<8x8xbf16>, vector<8x64xbf16>, vector<8x64xf32> -> vector<8x64xf32>
    %42 = tpu.concatenate %21, %41 in 1 : vector<8x64xf32>, vector<8x64xf32> -> vector<8x128xf32>
    %43 = arith.truncf %42 : vector<8x128xf32> to vector<8x128xbf16>
    %c0_22 = arith.constant 0 : index
    %c0_23 = arith.constant 0 : index
    %44 = vector.load %arg6[%c0_22, %c0_23] : memref<8x128xbf16, #tpu.memory_space<vmem>>, vector<8x128xbf16>
    tpu.vector_store %arg6[%c0_22, %c0_23], %43 {strides = array<i32>} : memref<8x128xbf16, #tpu.memory_space<vmem>>, vector<8x128xbf16>,
    return
  }
  func.func @transform_0(%arg0: i32, %arg1: i32) -> (i32, i32) {
    %c0_i32 = arith.constant 0 : i32
    %0 = arith.addi %c0_i32, %arg1 : i32
    %c0_i32_0 = arith.constant 0 : i32
    return %arg0, %0 : i32, i32
  }
  func.func @transform_1(%arg0: i32, %arg1: i32) -> (i32, i32) {
    %c1_i32 = arith.constant 1 : i32
    %0 = arith.addi %c1_i32, %arg1 : i32
    %c0_i32 = arith.constant 0 : i32
    return %arg0, %0 : i32, i32
  }
  func.func @transform_2(%arg0: i32, %arg1: i32) -> (i32, i32) {
    %c2_i32 = arith.constant 2 : i32
    %0 = arith.addi %c2_i32, %arg1 : i32
    %c0_i32 = arith.constant 0 : i32
    return %arg0, %0 : i32, i32
  }
  func.func @transform_3(%arg0: i32, %arg1: i32) -> (i32, i32, i32) {
    %c0_i32 = arith.constant 0 : i32
    %c0_i32_0 = arith.constant 0 : i32
    %c0_i32_1 = arith.constant 0 : i32
    return %arg0, %c0_i32, %c0_i32_0 : i32, i32, i32
  }
  func.func @transform_4(%arg0: i32, %arg1: i32) -> (i32, i32) {
    %c0_i32 = arith.constant 0 : i32
    return %arg0, %arg1 : i32, i32
  }
}

module attributes {stable_mosaic.version = 11 : i64} {
  func.func @_linear_resident_ln_kernel(%arg0: i32, %arg1: memref<16x128xbf16, #tpu.memory_space<vmem>>, %arg2: memref<128x128xbf16, #tpu.memory_space<vmem>>, %arg3: memref<1x128xf32, #tpu.memory_space<vmem>>, %arg4: memref<16x128xbf16, #tpu.memory_space<vmem>>, %arg5: memref<1x128xf32, #tpu.memory_space<vmem>>, %arg6: memref<1x128xf32, #tpu.memory_space<vmem>>, %arg7: memref<16x128xbf16, #tpu.memory_space<vmem>>) attributes {dimension_semantics = [#tpu.dimension_semantics<parallel>], iteration_bounds = array<i64: 1>, scalar_prefetch = 0 : i64, scratch_operands = 0 : i64, tpu.core_type = #tpu.core_type<tc>, window_params = [{transform_indices = @transform_0, window_bounds = array<i64: 16, 128>}, {pipeline_mode = #tpu.pipeline_mode<synchronous>, transform_indices = @transform_1, window_bounds = array<i64: 128, 128>}, {pipeline_mode = #tpu.pipeline_mode<synchronous>, transform_indices = @transform_2, window_bounds = array<i64: 1, 128>}, {transform_indices = @transform_3, window_bounds = array<i64: 16, 128>}, {pipeline_mode = #tpu.pipeline_mode<synchronous>, transform_indices = @transform_4, window_bounds = array<i64: 1, 128>}, {pipeline_mode = #tpu.pipeline_mode<synchronous>, transform_indices = @transform_5, window_bounds = array<i64: 1, 128>}, {transform_indices = @transform_6, window_bounds = array<i64: 16, 128>}]} {
    %c0 = arith.constant 0 : index
    %c0_0 = arith.constant 0 : index
    %0 = vector.load %arg1[%c0, %c0_0] : memref<16x128xbf16, #tpu.memory_space<vmem>>, vector<16x128xbf16>
    %c0_1 = arith.constant 0 : index
    %c0_2 = arith.constant 0 : index
    %1 = vector.load %arg2[%c0_1, %c0_2] : memref<128x128xbf16, #tpu.memory_space<vmem>>, vector<128x128xbf16>
    %cst = arith.constant dense<0.000000e+00> : vector<16x128xf32>
    %2 = tpu.matmul %0, %1, %cst {dimension_numbers = #tpu.dot_dimension_numbers<[1], [0], [0], [1], [0, 0, 1, 1], [], []>} : vector<16x128xbf16>, vector<128x128xbf16>, vector<16x128xf32> -> vector<16x128xf32>
    %c0_3 = arith.constant 0 : index
    %c0_4 = arith.constant 0 : index
    %3 = vector.load %arg3[%c0_3, %c0_4] : memref<1x128xf32, #tpu.memory_space<vmem>>, vector<1x128xf32>
    %4 = vector.broadcast %3 : vector<1x128xf32> to vector<16x128xf32>
    %5 = arith.addf %2, %4 : vector<16x128xf32>
    %c0_5 = arith.constant 0 : index
    %c0_6 = arith.constant 0 : index
    %6 = vector.load %arg4[%c0_5, %c0_6] : memref<16x128xbf16, #tpu.memory_space<vmem>>, vector<16x128xbf16>
    %7 = arith.extf %6 : vector<16x128xbf16> to vector<16x128xf32>
    %8 = arith.addf %5, %7 : vector<16x128xf32>
    %c0_7 = arith.constant 0 : index
    %c0_8 = arith.constant 0 : index
    %9 = vector.load %arg5[%c0_7, %c0_8] : memref<1x128xf32, #tpu.memory_space<vmem>>, vector<1x128xf32>
    %c0_9 = arith.constant 0 : index
    %c0_10 = arith.constant 0 : index
    %10 = vector.load %arg6[%c0_9, %c0_10] : memref<1x128xf32, #tpu.memory_space<vmem>>, vector<1x128xf32>
    %cst_11 = arith.constant dense<0.000000e+00> : vector<16xf32>
    %11 = vector.multi_reduction <add>, %8, %cst_11 [1] : vector<16x128xf32> to vector<16xf32>
    %12 = vector.shape_cast %11 : vector<16xf32> to vector<16x1xf32>
    %cst_12 = arith.constant 1.280000e+02 : f32
    %13 = vector.broadcast %cst_12 : f32 to vector<16x1xf32>
    %14 = arith.divf %12, %13 : vector<16x1xf32>
    %15 = vector.broadcast %14 : vector<16x1xf32> to vector<16x128xf32>
    %16 = arith.subf %8, %15 : vector<16x128xf32>
    %17 = arith.mulf %16, %16 : vector<16x128xf32>
    %cst_13 = arith.constant dense<0.000000e+00> : vector<16xf32>
    %18 = vector.multi_reduction <add>, %17, %cst_13 [1] : vector<16x128xf32> to vector<16xf32>
    %19 = vector.shape_cast %18 : vector<16xf32> to vector<16x1xf32>
    %cst_14 = arith.constant 1.280000e+02 : f32
    %20 = vector.broadcast %cst_14 : f32 to vector<16x1xf32>
    %21 = arith.divf %19, %20 : vector<16x1xf32>
    %22 = vector.broadcast %14 : vector<16x1xf32> to vector<16x128xf32>
    %23 = arith.subf %8, %22 : vector<16x128xf32>
    %cst_15 = arith.constant 9.99999996E-13 : f32
    %24 = vector.broadcast %cst_15 : f32 to vector<16x1xf32>
    %25 = arith.addf %21, %24 : vector<16x1xf32>
    %26 = math.rsqrt %25 : vector<16x1xf32>
    %27 = vector.broadcast %26 : vector<16x1xf32> to vector<16x128xf32>
    %28 = arith.mulf %23, %27 : vector<16x128xf32>
    %29 = vector.broadcast %9 : vector<1x128xf32> to vector<16x128xf32>
    %30 = arith.mulf %28, %29 : vector<16x128xf32>
    %31 = vector.broadcast %10 : vector<1x128xf32> to vector<16x128xf32>
    %32 = arith.addf %30, %31 : vector<16x128xf32>
    %33 = arith.truncf %32 : vector<16x128xf32> to vector<16x128xbf16>
    %c0_16 = arith.constant 0 : index
    %c0_17 = arith.constant 0 : index
    %34 = vector.load %arg7[%c0_16, %c0_17] : memref<16x128xbf16, #tpu.memory_space<vmem>>, vector<16x128xbf16>
    tpu.vector_store %arg7[%c0_16, %c0_17], %33 {strides = array<i32>} : memref<16x128xbf16, #tpu.memory_space<vmem>>, vector<16x128xbf16>,
    return
  }
  func.func @transform_0(%arg0: i32) -> (i32, i32) {
    %c0_i32 = arith.constant 0 : i32
    %c0_i32_0 = arith.constant 0 : i32
    return %arg0, %c0_i32 : i32, i32
  }
  func.func @transform_1(%arg0: i32) -> (i32, i32) {
    %c0_i32 = arith.constant 0 : i32
    %c0_i32_0 = arith.constant 0 : i32
    %c0_i32_1 = arith.constant 0 : i32
    return %c0_i32, %c0_i32_0 : i32, i32
  }
  func.func @transform_2(%arg0: i32) -> (i32, i32) {
    %c0_i32 = arith.constant 0 : i32
    %c0_i32_0 = arith.constant 0 : i32
    %c0_i32_1 = arith.constant 0 : i32
    return %c0_i32, %c0_i32_0 : i32, i32
  }
  func.func @transform_3(%arg0: i32) -> (i32, i32) {
    %c0_i32 = arith.constant 0 : i32
    %c0_i32_0 = arith.constant 0 : i32
    return %arg0, %c0_i32 : i32, i32
  }
  func.func @transform_4(%arg0: i32) -> (i32, i32) {
    %c0_i32 = arith.constant 0 : i32
    %c0_i32_0 = arith.constant 0 : i32
    %c0_i32_1 = arith.constant 0 : i32
    return %c0_i32, %c0_i32_0 : i32, i32
  }
  func.func @transform_5(%arg0: i32) -> (i32, i32) {
    %c0_i32 = arith.constant 0 : i32
    %c0_i32_0 = arith.constant 0 : i32
    %c0_i32_1 = arith.constant 0 : i32
    return %c0_i32, %c0_i32_0 : i32, i32
  }
  func.func @transform_6(%arg0: i32) -> (i32, i32) {
    %c0_i32 = arith.constant 0 : i32
    %c0_i32_0 = arith.constant 0 : i32
    return %arg0, %c0_i32 : i32, i32
  }
}

module attributes {stable_mosaic.version = 11 : i64} {
  func.func @_linear_resident_kernel(%arg0: i32, %arg1: memref<16x128xbf16, #tpu.memory_space<vmem>>, %arg2: memref<128x384xbf16, #tpu.memory_space<vmem>>, %arg3: memref<1x384xf32, #tpu.memory_space<vmem>>, %arg4: memref<16x384xbf16, #tpu.memory_space<vmem>>) attributes {dimension_semantics = [#tpu.dimension_semantics<parallel>], iteration_bounds = array<i64: 1>, scalar_prefetch = 0 : i64, scratch_operands = 0 : i64, tpu.core_type = #tpu.core_type<tc>, window_params = [{transform_indices = @transform_0, window_bounds = array<i64: 16, 128>}, {pipeline_mode = #tpu.pipeline_mode<synchronous>, transform_indices = @transform_1, window_bounds = array<i64: 128, 384>}, {pipeline_mode = #tpu.pipeline_mode<synchronous>, transform_indices = @transform_2, window_bounds = array<i64: 1, 384>}, {transform_indices = @transform_3, window_bounds = array<i64: 16, 384>}]} {
    %c0 = arith.constant 0 : index
    %c0_0 = arith.constant 0 : index
    %0 = vector.load %arg1[%c0, %c0_0] : memref<16x128xbf16, #tpu.memory_space<vmem>>, vector<16x128xbf16>
    %c0_1 = arith.constant 0 : index
    %c0_2 = arith.constant 0 : index
    %1 = vector.load %arg2[%c0_1, %c0_2] : memref<128x384xbf16, #tpu.memory_space<vmem>>, vector<128x384xbf16>
    %cst = arith.constant dense<0.000000e+00> : vector<16x384xf32>
    %2 = tpu.matmul %0, %1, %cst {dimension_numbers = #tpu.dot_dimension_numbers<[1], [0], [0], [1], [0, 0, 1, 1], [], []>} : vector<16x128xbf16>, vector<128x384xbf16>, vector<16x384xf32> -> vector<16x384xf32>
    %c0_3 = arith.constant 0 : index
    %c0_4 = arith.constant 0 : index
    %3 = vector.load %arg3[%c0_3, %c0_4] : memref<1x384xf32, #tpu.memory_space<vmem>>, vector<1x384xf32>
    %4 = vector.broadcast %3 : vector<1x384xf32> to vector<16x384xf32>
    %5 = arith.addf %2, %4 : vector<16x384xf32>
    %6 = arith.truncf %5 : vector<16x384xf32> to vector<16x384xbf16>
    %c0_5 = arith.constant 0 : index
    %c0_6 = arith.constant 0 : index
    %7 = vector.load %arg4[%c0_5, %c0_6] : memref<16x384xbf16, #tpu.memory_space<vmem>>, vector<16x384xbf16>
    tpu.vector_store %arg4[%c0_5, %c0_6], %6 {strides = array<i32>} : memref<16x384xbf16, #tpu.memory_space<vmem>>, vector<16x384xbf16>,
    return
  }
  func.func @transform_0(%arg0: i32) -> (i32, i32) {
    %c0_i32 = arith.constant 0 : i32
    %c0_i32_0 = arith.constant 0 : i32
    return %arg0, %c0_i32 : i32, i32
  }
  func.func @transform_1(%arg0: i32) -> (i32, i32) {
    %c0_i32 = arith.constant 0 : i32
    %c0_i32_0 = arith.constant 0 : i32
    %c0_i32_1 = arith.constant 0 : i32
    return %c0_i32, %c0_i32_0 : i32, i32
  }
  func.func @transform_2(%arg0: i32) -> (i32, i32) {
    %c0_i32 = arith.constant 0 : i32
    %c0_i32_0 = arith.constant 0 : i32
    %c0_i32_1 = arith.constant 0 : i32
    return %c0_i32, %c0_i32_0 : i32, i32
  }
  func.func @transform_3(%arg0: i32) -> (i32, i32) {
    %c0_i32 = arith.constant 0 : i32
    %c0_i32_0 = arith.constant 0 : i32
    return %arg0, %c0_i32 : i32, i32
  }
}

module attributes {stable_mosaic.version = 11 : i64} {
  func.func @_linear_resident_ln_kernel(%arg0: i32, %arg1: memref<16x256xbf16, #tpu.memory_space<vmem>>, %arg2: memref<256x128xbf16, #tpu.memory_space<vmem>>, %arg3: memref<1x128xf32, #tpu.memory_space<vmem>>, %arg4: memref<16x128xbf16, #tpu.memory_space<vmem>>, %arg5: memref<1x128xf32, #tpu.memory_space<vmem>>, %arg6: memref<1x128xf32, #tpu.memory_space<vmem>>, %arg7: memref<16x128xbf16, #tpu.memory_space<vmem>>) attributes {dimension_semantics = [#tpu.dimension_semantics<parallel>], iteration_bounds = array<i64: 1>, scalar_prefetch = 0 : i64, scratch_operands = 0 : i64, tpu.core_type = #tpu.core_type<tc>, window_params = [{transform_indices = @transform_0, window_bounds = array<i64: 16, 256>}, {pipeline_mode = #tpu.pipeline_mode<synchronous>, transform_indices = @transform_1, window_bounds = array<i64: 256, 128>}, {pipeline_mode = #tpu.pipeline_mode<synchronous>, transform_indices = @transform_2, window_bounds = array<i64: 1, 128>}, {transform_indices = @transform_3, window_bounds = array<i64: 16, 128>}, {pipeline_mode = #tpu.pipeline_mode<synchronous>, transform_indices = @transform_4, window_bounds = array<i64: 1, 128>}, {pipeline_mode = #tpu.pipeline_mode<synchronous>, transform_indices = @transform_5, window_bounds = array<i64: 1, 128>}, {transform_indices = @transform_6, window_bounds = array<i64: 16, 128>}]} {
    %c0 = arith.constant 0 : index
    %c0_0 = arith.constant 0 : index
    %0 = vector.load %arg1[%c0, %c0_0] : memref<16x256xbf16, #tpu.memory_space<vmem>>, vector<16x256xbf16>
    %c0_1 = arith.constant 0 : index
    %c0_2 = arith.constant 0 : index
    %1 = vector.load %arg2[%c0_1, %c0_2] : memref<256x128xbf16, #tpu.memory_space<vmem>>, vector<256x128xbf16>
    %cst = arith.constant dense<0.000000e+00> : vector<16x128xf32>
    %2 = tpu.matmul %0, %1, %cst {dimension_numbers = #tpu.dot_dimension_numbers<[1], [0], [0], [1], [0, 0, 1, 1], [], []>} : vector<16x256xbf16>, vector<256x128xbf16>, vector<16x128xf32> -> vector<16x128xf32>
    %c0_3 = arith.constant 0 : index
    %c0_4 = arith.constant 0 : index
    %3 = vector.load %arg3[%c0_3, %c0_4] : memref<1x128xf32, #tpu.memory_space<vmem>>, vector<1x128xf32>
    %4 = vector.broadcast %3 : vector<1x128xf32> to vector<16x128xf32>
    %5 = arith.addf %2, %4 : vector<16x128xf32>
    %c0_5 = arith.constant 0 : index
    %c0_6 = arith.constant 0 : index
    %6 = vector.load %arg4[%c0_5, %c0_6] : memref<16x128xbf16, #tpu.memory_space<vmem>>, vector<16x128xbf16>
    %7 = arith.extf %6 : vector<16x128xbf16> to vector<16x128xf32>
    %8 = arith.addf %5, %7 : vector<16x128xf32>
    %c0_7 = arith.constant 0 : index
    %c0_8 = arith.constant 0 : index
    %9 = vector.load %arg5[%c0_7, %c0_8] : memref<1x128xf32, #tpu.memory_space<vmem>>, vector<1x128xf32>
    %c0_9 = arith.constant 0 : index
    %c0_10 = arith.constant 0 : index
    %10 = vector.load %arg6[%c0_9, %c0_10] : memref<1x128xf32, #tpu.memory_space<vmem>>, vector<1x128xf32>
    %cst_11 = arith.constant dense<0.000000e+00> : vector<16xf32>
    %11 = vector.multi_reduction <add>, %8, %cst_11 [1] : vector<16x128xf32> to vector<16xf32>
    %12 = vector.shape_cast %11 : vector<16xf32> to vector<16x1xf32>
    %cst_12 = arith.constant 1.280000e+02 : f32
    %13 = vector.broadcast %cst_12 : f32 to vector<16x1xf32>
    %14 = arith.divf %12, %13 : vector<16x1xf32>
    %15 = vector.broadcast %14 : vector<16x1xf32> to vector<16x128xf32>
    %16 = arith.subf %8, %15 : vector<16x128xf32>
    %17 = arith.mulf %16, %16 : vector<16x128xf32>
    %cst_13 = arith.constant dense<0.000000e+00> : vector<16xf32>
    %18 = vector.multi_reduction <add>, %17, %cst_13 [1] : vector<16x128xf32> to vector<16xf32>
    %19 = vector.shape_cast %18 : vector<16xf32> to vector<16x1xf32>
    %cst_14 = arith.constant 1.280000e+02 : f32
    %20 = vector.broadcast %cst_14 : f32 to vector<16x1xf32>
    %21 = arith.divf %19, %20 : vector<16x1xf32>
    %22 = vector.broadcast %14 : vector<16x1xf32> to vector<16x128xf32>
    %23 = arith.subf %8, %22 : vector<16x128xf32>
    %cst_15 = arith.constant 9.99999996E-13 : f32
    %24 = vector.broadcast %cst_15 : f32 to vector<16x1xf32>
    %25 = arith.addf %21, %24 : vector<16x1xf32>
    %26 = math.rsqrt %25 : vector<16x1xf32>
    %27 = vector.broadcast %26 : vector<16x1xf32> to vector<16x128xf32>
    %28 = arith.mulf %23, %27 : vector<16x128xf32>
    %29 = vector.broadcast %9 : vector<1x128xf32> to vector<16x128xf32>
    %30 = arith.mulf %28, %29 : vector<16x128xf32>
    %31 = vector.broadcast %10 : vector<1x128xf32> to vector<16x128xf32>
    %32 = arith.addf %30, %31 : vector<16x128xf32>
    %33 = arith.truncf %32 : vector<16x128xf32> to vector<16x128xbf16>
    %c0_16 = arith.constant 0 : index
    %c0_17 = arith.constant 0 : index
    %34 = vector.load %arg7[%c0_16, %c0_17] : memref<16x128xbf16, #tpu.memory_space<vmem>>, vector<16x128xbf16>
    tpu.vector_store %arg7[%c0_16, %c0_17], %33 {strides = array<i32>} : memref<16x128xbf16, #tpu.memory_space<vmem>>, vector<16x128xbf16>,
    return
  }
  func.func @transform_0(%arg0: i32) -> (i32, i32) {
    %c0_i32 = arith.constant 0 : i32
    %c0_i32_0 = arith.constant 0 : i32
    return %arg0, %c0_i32 : i32, i32
  }
  func.func @transform_1(%arg0: i32) -> (i32, i32) {
    %c0_i32 = arith.constant 0 : i32
    %c0_i32_0 = arith.constant 0 : i32
    %c0_i32_1 = arith.constant 0 : i32
    return %c0_i32, %c0_i32_0 : i32, i32
  }
  func.func @transform_2(%arg0: i32) -> (i32, i32) {
    %c0_i32 = arith.constant 0 : i32
    %c0_i32_0 = arith.constant 0 : i32
    %c0_i32_1 = arith.constant 0 : i32
    return %c0_i32, %c0_i32_0 : i32, i32
  }
  func.func @transform_3(%arg0: i32) -> (i32, i32) {
    %c0_i32 = arith.constant 0 : i32
    %c0_i32_0 = arith.constant 0 : i32
    return %arg0, %c0_i32 : i32, i32
  }
  func.func @transform_4(%arg0: i32) -> (i32, i32) {
    %c0_i32 = arith.constant 0 : i32
    %c0_i32_0 = arith.constant 0 : i32
    %c0_i32_1 = arith.constant 0 : i32
    return %c0_i32, %c0_i32_0 : i32, i32
  }
  func.func @transform_5(%arg0: i32) -> (i32, i32) {
    %c0_i32 = arith.constant 0 : i32
    %c0_i32_0 = arith.constant 0 : i32
    %c0_i32_1 = arith.constant 0 : i32
    return %c0_i32, %c0_i32_0 : i32, i32
  }
  func.func @transform_6(%arg0: i32) -> (i32, i32) {
    %c0_i32 = arith.constant 0 : i32
    %c0_i32_0 = arith.constant 0 : i32
    return %arg0, %c0_i32 : i32, i32
  }
}

module attributes {stable_mosaic.version = 11 : i64} {
  func.func @_linear_resident_kernel(%arg0: i32, %arg1: memref<16x128xbf16, #tpu.memory_space<vmem>>, %arg2: memref<128x256xbf16, #tpu.memory_space<vmem>>, %arg3: memref<1x256xf32, #tpu.memory_space<vmem>>, %arg4: memref<16x256xbf16, #tpu.memory_space<vmem>>) attributes {dimension_semantics = [#tpu.dimension_semantics<parallel>], iteration_bounds = array<i64: 1>, scalar_prefetch = 0 : i64, scratch_operands = 0 : i64, tpu.core_type = #tpu.core_type<tc>, window_params = [{transform_indices = @transform_0, window_bounds = array<i64: 16, 128>}, {pipeline_mode = #tpu.pipeline_mode<synchronous>, transform_indices = @transform_1, window_bounds = array<i64: 128, 256>}, {pipeline_mode = #tpu.pipeline_mode<synchronous>, transform_indices = @transform_2, window_bounds = array<i64: 1, 256>}, {transform_indices = @transform_3, window_bounds = array<i64: 16, 256>}]} {
    %c0 = arith.constant 0 : index
    %c0_0 = arith.constant 0 : index
    %0 = vector.load %arg1[%c0, %c0_0] : memref<16x128xbf16, #tpu.memory_space<vmem>>, vector<16x128xbf16>
    %c0_1 = arith.constant 0 : index
    %c0_2 = arith.constant 0 : index
    %1 = vector.load %arg2[%c0_1, %c0_2] : memref<128x256xbf16, #tpu.memory_space<vmem>>, vector<128x256xbf16>
    %cst = arith.constant dense<0.000000e+00> : vector<16x256xf32>
    %2 = tpu.matmul %0, %1, %cst {dimension_numbers = #tpu.dot_dimension_numbers<[1], [0], [0], [1], [0, 0, 1, 1], [], []>} : vector<16x128xbf16>, vector<128x256xbf16>, vector<16x256xf32> -> vector<16x256xf32>
    %c0_3 = arith.constant 0 : index
    %c0_4 = arith.constant 0 : index
    %3 = vector.load %arg3[%c0_3, %c0_4] : memref<1x256xf32, #tpu.memory_space<vmem>>, vector<1x256xf32>
    %4 = vector.broadcast %3 : vector<1x256xf32> to vector<16x256xf32>
    %5 = arith.addf %2, %4 : vector<16x256xf32>
    %cst_5 = arith.constant 5.000000e-01 : f32
    %6 = vector.broadcast %cst_5 : f32 to vector<16x256xf32>
    %7 = arith.mulf %6, %5 : vector<16x256xf32>
    %cst_6 = arith.constant 0.707106769 : f32
    %8 = vector.broadcast %cst_6 : f32 to vector<16x256xf32>
    %9 = arith.mulf %5, %8 : vector<16x256xf32>
    %10 = math.erf %9 : vector<16x256xf32>
    %cst_7 = arith.constant 1.000000e+00 : f32
    %11 = vector.broadcast %cst_7 : f32 to vector<16x256xf32>
    %12 = arith.addf %11, %10 : vector<16x256xf32>
    %13 = arith.mulf %7, %12 : vector<16x256xf32>
    %14 = arith.truncf %13 : vector<16x256xf32> to vector<16x256xbf16>
    %c0_8 = arith.constant 0 : index
    %c0_9 = arith.constant 0 : index
    %15 = vector.load %arg4[%c0_8, %c0_9] : memref<16x256xbf16, #tpu.memory_space<vmem>>, vector<16x256xbf16>
    tpu.vector_store %arg4[%c0_8, %c0_9], %14 {strides = array<i32>} : memref<16x256xbf16, #tpu.memory_space<vmem>>, vector<16x256xbf16>,
    return
  }
  func.func @transform_0(%arg0: i32) -> (i32, i32) {
    %c0_i32 = arith.constant 0 : i32
    %c0_i32_0 = arith.constant 0 : i32
    return %arg0, %c0_i32 : i32, i32
  }
  func.func @transform_1(%arg0: i32) -> (i32, i32) {
    %c0_i32 = arith.constant 0 : i32
    %c0_i32_0 = arith.constant 0 : i32
    %c0_i32_1 = arith.constant 0 : i32
    return %c0_i32, %c0_i32_0 : i32, i32
  }
  func.func @transform_2(%arg0: i32) -> (i32, i32) {
    %c0_i32 = arith.constant 0 : i32
    %c0_i32_0 = arith.constant 0 : i32
    %c0_i32_1 = arith.constant 0 : i32
    return %c0_i32, %c0_i32_0 : i32, i32
  }
  func.func @transform_3(%arg0: i32) -> (i32, i32) {
    %c0_i32 = arith.constant 0 : i32
    %c0_i32_0 = arith.constant 0 : i32
    return %arg0, %c0_i32 : i32, i32
  }
}

</mosaic_0001>

<llo_original>
// kernel: bert_classifier_forward.11
$region0: #{bert_classifier_forward.11}
  #allocation0 [shape = 'u32[]', space=smem, size = 0x4, offset = 0x4, fixed_abs, tag = 'smem constant byte address 0x4 - core index']
  #allocation1 [shape = 'u32[144,128]{1,0:T(1,128)}', space=vmem, size = 0x12000, scoped, tag = 'internal scratch']
  %s0 = inlined_call_operand.vmem [shape: bf16[16,128], index: 0, kind: input, shape index: {}]
  %s1 = inlined_call_operand.vmem [shape: f32[1,128], index: 1, kind: input, shape index: {}]
  %s2 = inlined_call_operand.vmem [shape: f32[1,128], index: 2, kind: input, shape index: {}]
  %s3 = inlined_call_operand.vmem [shape: bf16[16,128], index: 3, kind: output, shape index: {}]
  %s4 = sld [smem:[#allocation0]]
  $region22: #{bert_classifier_forward.11} parent=0
    _
  %s6 = ssub.s32 1, %s4
  %s7 = scalar_select 0, %s6, %s4
  // Predicated region
  $region2: #{bert_classifier_forward.11} parent=0 // pred_check
    _
  $region3: #{bert_classifier_forward.11} parent=0 // pred_check_branch
    %9 = sbr.rel (0) target = $region5
  $region4: #{bert_classifier_forward.11} parent=0 // pred_region
    _
  $region5: #{bert_classifier_forward.11} parent=0 // pred_fallthru
    _
  // Predicated region
  $region6: #{bert_classifier_forward.11} parent=0 // pred_check
    _
  $region7: #{bert_classifier_forward.11} parent=0 // pred_check_branch
    %11 = sbr.rel (0) target = $region9
  $region8: #{bert_classifier_forward.11} parent=0 // pred_region
    _
  $region9: #{bert_classifier_forward.11} parent=0 // pred_fallthru
    _
  // Predicated region
  $region10: #{bert_classifier_forward.11} parent=0 // pred_check
    _
  $region11: #{bert_classifier_forward.11} parent=0 // pred_check_branch
    %13 = sbr.rel (0) target = $region13
  $region12: #{bert_classifier_forward.11} parent=0 // pred_region
    _
  $region13: #{bert_classifier_forward.11} parent=0 // pred_fallthru
    _
  %v14 = vld [vmem:[%s0] sm:$0xf]
  %v15 = vld [vmem:[%s0 + $0x4] sm:$0xf]
  %v16 = vunpack.c.l.bf16 %v14
  %v17 = vunpack.c.l.bf16 %v15
  %v18 = vld [vmem:[%s1] sm:$0x1]
  %v19 = vld [vmem:[%s2] sm:$0x1]
  %20 = vadd.xlane.f32.xlu0 %v16
  %v21 = vpop.xlane.xlu0 %20
  %22 = vadd.xlane.f32.xlu0 %v17
  %v23 = vpop.xlane.xlu0 %22
  %v24 = vrcp.pop 128.0
  %v25 = vmul.f32 %v21, %v24
  %v26 = vmul.f32 %v23, %v24
  %v27 = vsub.f32 %v16, %v25
  %v28 = vsub.f32 %v17, %v26
  %v29 = vmul.f32 %v27, %v27
  %v30 = vmul.f32 %v28, %v28
  %31 = vadd.xlane.f32.xlu0 %v29
  %v32 = vpop.xlane.xlu0 %31
  %33 = vadd.xlane.f32.xlu0 %v30
  %v34 = vpop.xlane.xlu0 %33
  %v35 = vmul.f32 %v32, %v24
  %v36 = vmul.f32 %v34, %v24
  %v37 = vadd.f32 %v35, 1e-12
  %v38 = vadd.f32 %v36, 1e-12
  %v39 = vrsqrt.pop %v37
  %v40 = vrsqrt.pop %v38
  %v41 = vmul.f32 %v27, %v39
  %v42 = vmul.f32 %v28, %v40
  %v44 = vlaneseq
  %v45 = vshrl.u32 %v44, 7
  %v46 = vsub.s32 0, %v45
  %v47 = vrot.slane %v18, %v46
  %v49 = vmul.f32 %v41, %v47
  %v50 = vmul.f32 %v42, %v47
  %v52 = vlaneseq
  %v53 = vshrl.u32 %v52, 7
  %v54 = vsub.s32 0, %v53
  %v55 = vrot.slane %v19, %v54
  %v57 = vadd.f32 %v49, %v55
  %v58 = vadd.f32 %v50, %v55
  %v59 = vpack.c.bf16 %v58, %v57
  %v61 = vunpack.c.l.b16 %v59
  %v62 = vunpack.c.h.b16 %v59
  %v63 = vpack.c.b16 %v61, %v61
  %v64 = vpack.c.b16 %v62, %v62
  %67 = vst [vmem:[%s3] sm:$0xf] %v63
  %68 = vst [vmem:[%s3 + $0x4] sm:$0xf] %v64
  // Predicated region
  $region14: #{bert_classifier_forward.11} parent=0 // pred_check
    _
  $region15: #{bert_classifier_forward.11} parent=0 // pred_check_branch
    %70 = sbr.rel (0) target = $region17
  $region16: #{bert_classifier_forward.11} parent=0 // pred_region
    _
  $region17: #{bert_classifier_forward.11} parent=0 // pred_fallthru
    _
  // Predicated region
  $region18: #{bert_classifier_forward.11} parent=0 // pred_check
    _
  $region19: #{bert_classifier_forward.11} parent=0 // pred_check_branch
    %72 = sbr.rel (0) target = $region21
  $region20: #{bert_classifier_forward.11} parent=0 // pred_region
    _
  $region21: #{bert_classifier_forward.11} parent=0 // pred_fallthru
    _

// kernel: bert_classifier_forward.14
$region0: #{bert_classifier_forward.14}
  #allocation0 [shape = 'u32[]', space=smem, size = 0x4, offset = 0x4, fixed_abs, tag = 'smem constant byte address 0x4 - core index']
  #allocation1 [shape = 'u32[144,128]{1,0:T(1,128)}', space=vmem, size = 0x12000, scoped, tag = 'internal scratch']
  %s0 = inlined_call_operand.vmem [shape: bf16[16,128], index: 0, kind: input, shape index: {}]
  %s1 = inlined_call_operand.vmem [shape: bf16[128,128], index: 1, kind: input, shape index: {}]
  %s2 = inlined_call_operand.vmem [shape: f32[1,128], index: 2, kind: input, shape index: {}]
  %s3 = inlined_call_operand.vmem [shape: bf16[16,128], index: 3, kind: input, shape index: {}]
  %s4 = inlined_call_operand.vmem [shape: f32[1,128], index: 4, kind: input, shape index: {}]
  %s5 = inlined_call_operand.vmem [shape: f32[1,128], index: 5, kind: input, shape index: {}]
  %s6 = inlined_call_operand.vmem [shape: bf16[16,128], index: 6, kind: output, shape index: {}]
  %s7 = sld [smem:[#allocation0]]
  $region34: #{bert_classifier_forward.14} parent=0
    _
  %s9 = ssub.s32 1, %s7
  %s10 = scalar_select 0, %s9, %s7
  // Predicated region
  $region2: #{bert_classifier_forward.14} parent=0 // pred_check
    _
  $region3: #{bert_classifier_forward.14} parent=0 // pred_check_branch
    %12 = sbr.rel (0) target = $region5
  $region4: #{bert_classifier_forward.14} parent=0 // pred_region
    _
  $region5: #{bert_classifier_forward.14} parent=0 // pred_fallthru
    _
  // Predicated region
  $region6: #{bert_classifier_forward.14} parent=0 // pred_check
    _
  $region7: #{bert_classifier_forward.14} parent=0 // pred_check_branch
    %14 = sbr.rel (0) target = $region9
  $region8: #{bert_classifier_forward.14} parent=0 // pred_region
    _
  $region9: #{bert_classifier_forward.14} parent=0 // pred_fallthru
    _
  // Predicated region
  $region10: #{bert_classifier_forward.14} parent=0 // pred_check
    _
  $region11: #{bert_classifier_forward.14} parent=0 // pred_check_branch
    %16 = sbr.rel (0) target = $region13
  $region12: #{bert_classifier_forward.14} parent=0 // pred_region
    _
  $region13: #{bert_classifier_forward.14} parent=0 // pred_fallthru
    _
  // Predicated region
  $region14: #{bert_classifier_forward.14} parent=0 // pred_check
    _
  $region15: #{bert_classifier_forward.14} parent=0 // pred_check_branch
    %18 = sbr.rel (0) target = $region17
  $region16: #{bert_classifier_forward.14} parent=0 // pred_region
    _
  $region17: #{bert_classifier_forward.14} parent=0 // pred_fallthru
    _
  // Predicated region
  $region18: #{bert_classifier_forward.14} parent=0 // pred_check
    _
  $region19: #{bert_classifier_forward.14} parent=0 // pred_check_branch
    %20 = sbr.rel (0) target = $region21
  $region20: #{bert_classifier_forward.14} parent=0 // pred_region
    _
  $region21: #{bert_classifier_forward.14} parent=0 // pred_fallthru
    _
  // Predicated region
  $region22: #{bert_classifier_forward.14} parent=0 // pred_check
    _
  $region23: #{bert_classifier_forward.14} parent=0 // pred_check_branch
    %22 = sbr.rel (0) target = $region25
  $region24: #{bert_classifier_forward.14} parent=0 // pred_region
    _
  $region25: #{bert_classifier_forward.14} parent=0 // pred_fallthru
    _
  %v24 = vld [vmem:[%s0] sm:$0xf]
  %v25 = vld [vmem:[%s0 + $0x4] sm:$0xf]
  %v26 = vld [vmem:[%s1] sm:$0xf]
  %v27 = vld [vmem:[%s1 + $0x4] sm:$0xf]
  %v28 = vld [vmem:[%s1 + $0x8] sm:$0xf]
  %v29 = vld [vmem:[%s1 + $0xc] sm:$0xf]
  %v30 = vld [vmem:[%s1 + $0x10] sm:$0xf]
  %v31 = vld [vmem:[%s1 + $0x14] sm:$0xf]
  %v32 = vld [vmem:[%s1 + $0x18] sm:$0xf]
  %v33 = vld [vmem:[%s1 + $0x1c] sm:$0xf]
  %v34 = vld [vmem:[%s1 + $0x20] sm:$0xf]
  %v35 = vld [vmem:[%s1 + $0x24] sm:$0xf]
  %v36 = vld [vmem:[%s1 + $0x28] sm:$0xf]
  %v37 = vld [vmem:[%s1 + $0x2c] sm:$0xf]
  %v38 = vld [vmem:[%s1 + $0x30] sm:$0xf]
  %v39 = vld [vmem:[%s1 + $0x34] sm:$0xf]
  %v40 = vld [vmem:[%s1 + $0x38] sm:$0xf]
  %v41 = vld [vmem:[%s1 + $0x3c] sm:$0xf]
  %v42 = vld [vmem:[%s2] sm:$0x1]
  %v44 = vlaneseq
  %v45 = vshrl.u32 %v44, 7
  %v46 = vsub.s32 0, %v45
  %v47 = vrot.slane %v42, %v46
  %v51 = vunpack.c.l.b16 %v24
  %v52 = vunpack.c.l.b16 %v25
  %v53 = vpack.c.b16 %v52, %v51
  %v71 = vunpack.c.l.b16 %v26
  %v72 = vunpack.c.l.b16 %v27
  %v73 = vunpack.c.l.b16 %v28
  %v74 = vunpack.c.l.b16 %v29
  %v75 = vunpack.c.l.b16 %v30
  %v76 = vunpack.c.l.b16 %v31
  %v77 = vunpack.c.l.b16 %v32
  %v78 = vunpack.c.l.b16 %v33
  %v79 = vunpack.c.l.b16 %v34
  %v80 = vunpack.c.l.b16 %v35
  %v81 = vunpack.c.l.b16 %v36
  %v82 = vunpack.c.l.b16 %v37
  %v83 = vunpack.c.l.b16 %v38
  %v84 = vunpack.c.l.b16 %v39
  %v85 = vunpack.c.l.b16 %v40
  %v86 = vunpack.c.l.b16 %v41
  %v87 = vpack.c.b16 %v72, %v71
  %v88 = vpack.c.b16 %v74, %v73
  %v89 = vpack.c.b16 %v76, %v75
  %v90 = vpack.c.b16 %v78, %v77
  %v91 = vpack.c.b16 %v80, %v79
  %v92 = vpack.c.b16 %v82, %v81
  %v93 = vpack.c.b16 %v84, %v83
  %v94 = vpack.c.b16 %v86, %v85
  %103 = vmatprep.subr.bf16.mxu0 0
  %104 = vmatpush1.bf16.msra.mxu0 %v94
  %105 = vmatprep.subr.bf16.mxu0 0
  %106 = vmatpush1.bf16.msra.mxu0 %v93
  %107 = vmatprep.subr.bf16.mxu0 0
  %108 = vmatpush1.bf16.msra.mxu0 %v92
  %109 = vmatprep.subr.bf16.mxu0 0
  %110 = vmatpush1.bf16.msra.mxu0 %v91
  %111 = vmatprep.subr.bf16.mxu0 0
  %112 = vmatpush1.bf16.msra.mxu0 %v90
  %113 = vmatprep.subr.bf16.mxu0 0
  %114 = vmatpush1.bf16.msra.mxu0 %v89
  %115 = vmatprep.subr.bf16.mxu0 0
  %116 = vmatpush1.bf16.msra.mxu0 %v88
  %117 = vmatprep.subr.bf16.mxu0 0
  %118 = vmatpush1.bf16.msra.mxu0 %v87
  %119 = vmatprep.subr.bf16.mxu0 0
  %120 = vmatpush2.bf16.msra.mxu0 0
  %121 = vmatprep.subr.bf16.mxu0 0
  %122 = vmatpush2.bf16.msra.mxu0 0
  %123 = vmatprep.subr.bf16.mxu0 0
  %124 = vmatpush2.bf16.msra.mxu0 0
  %125 = vmatprep.subr.bf16.mxu0 0
  %126 = vmatpush2.bf16.msra.mxu0 0
  %127 = vmatprep.subr.bf16.mxu0 0
  %128 = vmatpush2.bf16.msra.mxu0 0
  %129 = vmatprep.subr.bf16.mxu0 0
  %130 = vmatpush2.bf16.msra.mxu0 0
  %131 = vmatprep.subr.bf16.mxu0 0
  %132 = vmatpush2.bf16.msra.mxu0 0
  %133 = vmatprep.subr.bf16.mxu0 0
  %134 = vmatpush2.bf16.msra.mxu0 0
  %135 = vmatprep.mubr.bf16.mxu0 0
  %136 = vmatmul.mubr.bf16.gmra.mxu0 %v53
  %v137 = vpop.f32.mrf.mxu0
  %v138 = vadd.f32 %v47, %v137
  %v139 = vpop.f32.mrf.mxu0
  %v140 = vpop.f32.mrf.mxu0
  %v141 = vadd.f32 %v47, %v140
  %v142 = vpop.f32.mrf.mxu0
  %143 = vdwg.mxu0
  %v144 = vld [vmem:[%s3] sm:$0xf]
  %v145 = vld [vmem:[%s3 + $0x4] sm:$0xf]
  %v146 = vunpack.c.l.bf16 %v144
  %v147 = vunpack.c.l.bf16 %v145
  %v148 = vadd.f32 %v138, %v146
  %v149 = vadd.f32 %v141, %v147
  %v150 = vld [vmem:[%s4] sm:$0x1]
  %v151 = vld [vmem:[%s5] sm:$0x1]
  %152 = vadd.xlane.f32.xlu0 %v148
  %v153 = vpop.xlane.xlu0 %152
  %154 = vadd.xlane.f32.xlu0 %v149
  %v155 = vpop.xlane.xlu0 %154
  %v156 = vrcp.pop 128.0
  %v157 = vmul.f32 %v153, %v156
  %v158 = vmul.f32 %v155, %v156
  %v159 = vsub.f32 %v148, %v157
  %v160 = vsub.f32 %v149, %v158
  %v161 = vmul.f32 %v159, %v159
  %v162 = vmul.f32 %v160, %v160
  %163 = vadd.xlane.f32.xlu0 %v161
  %v164 = vpop.xlane.xlu0 %163
  %165 = vadd.xlane.f32.xlu0 %v162
  %v166 = vpop.xlane.xlu0 %165
  %v167 = vmul.f32 %v164, %v156
  %v168 = vmul.f32 %v166, %v156
  %v169 = vadd.f32 %v167, 1e-12
  %v170 = vadd.f32 %v168, 1e-12
  %v171 = vrsqrt.pop %v169
  %v172 = vrsqrt.pop %v170
  %v173 = vmul.f32 %v159, %v171
  %v174 = vmul.f32 %v160, %v172
  %v176 = vlaneseq
  %v177 = vshrl.u32 %v176, 7
  %v178 = vsub.s32 0, %v177
  %v179 = vrot.slane %v150, %v178
  %v181 = vmul.f32 %v173, %v179
  %v182 = vmul.f32 %v174, %v179
  %v184 = vlaneseq
  %v185 = vshrl.u32 %v184, 7
  %v186 = vsub.s32 0, %v185
  %v187 = vrot.slane %v151, %v186
  %v189 = vadd.f32 %v181, %v187
  %v190 = vadd.f32 %v182, %v187
  %v191 = vpack.c.bf16 %v190, %v189
  %v193 = vunpack.c.l.b16 %v191
  %v194 = vunpack.c.h.b16 %v191
  %v195 = vpack.c.b16 %v193, %v193
  %v196 = vpack.c.b16 %v194, %v194
  %199 = vst [vmem:[%s6] sm:$0xf] %v195
  %200 = vst [vmem:[%s6 + $0x4] sm:$0xf] %v196
  // Predicated region
  $region26: #{bert_classifier_forward.14} parent=0 // pred_check
    _
  $region27: #{bert_classifier_forward.14} parent=0 // pred_check_branch
    %202 = sbr.rel (0) target = $region29
  $region28: #{bert_classifier_forward.14} parent=0 // pred_region
    _
  $region29: #{bert_classifier_forward.14} parent=0 // pred_fallthru
    _
  // Predicated region
  $region30: #{bert_classifier_forward.14} parent=0 // pred_check
    _
  $region31: #{bert_classifier_forward.14} parent=0 // pred_check_branch
    %204 = sbr.rel (0) target = $region33
  $region32: #{bert_classifier_forward.14} parent=0 // pred_region
    _
  $region33: #{bert_classifier_forward.14} parent=0 // pred_fallthru
    _

// kernel: bert_classifier_forward.13
$region0: #{bert_classifier_forward.13}
  #allocation0 [shape = 'u32[]', space=smem, size = 0x4, offset = 0x4, fixed_abs, tag = 'smem constant byte address 0x4 - core index']
  #allocation1 [shape = 'u32[144,128]{1,0:T(1,128)}', space=vmem, size = 0x12000, scoped, tag = 'internal scratch']
  %s0 = inlined_call_operand.vmem [shape: bf16[16,384], index: 0, kind: input, shape index: {}, may-alias: {0,1,2}]
  %s1 = inlined_call_operand.vmem [shape: bf16[16,384], index: 1, kind: input, shape index: {}, may-alias: {0,1,2}]
  %s2 = inlined_call_operand.vmem [shape: bf16[16,384], index: 2, kind: input, shape index: {}, may-alias: {0,1,2}]
  %s3 = inlined_call_operand.vmem [shape: f32[2,1,8], index: 3, kind: input, shape index: {}]
  %s4 = inlined_call_operand.vmem [shape: bf16[16,128], index: 4, kind: output, shape index: {}]
  %s5 = sld [smem:[#allocation0]]
  $region49: #{bert_classifier_forward.13} parent=0
    _
  %s7 = ssub.s32 1, %s5
  %s8 = scalar_select 0, %s7, %s5
  loop: start=0, step=1, limit=4
  $region2: #{bert_classifier_forward.13} parent=0 // loop_pre_header
    _
  $region3: #{bert_classifier_forward.13} parent=0 // loop_header
    %s10 = sphi 0, %s14
    %p11 = scmp.ge.s32.totalorder %s10, 4
    %s17 = sphi 0, %s29
    %s18 = sphi 0, %s25
    %s19 = sphi 0, %s17
    %s20 = sphi 0, %s18
    %s21 = sphi 0, %s19
    %s22 = sphi 0, %s20
    %s34 = sphi 0, %s36
    %s37 = sphi 0, %s34
    %s38 = sphi 0, %s37
    %s54 = sphi 0, %s38
    %s64 = sphi 0, %s66
    %s67 = sphi 0, %s64
    %s68 = sphi 0, %s67
    %s84 = sphi 0, %s68
    %s94 = sphi 0, %s96
    %s97 = sphi 0, %s94
    %s98 = sphi 0, %s97
    %s114 = sphi 0, %s98
    %s120 = sphi 0, %s122
    %s123 = sphi 0, %s120
    %s124 = sphi 0, %s123
    %s140 = sphi 0, %s124
    %s148 = sphi 0, %s150
    %s151 = sphi 0, %s148
    %s152 = sphi 0, %s151
    %s168 = sphi 0, %s152
  $region4: #{bert_classifier_forward.13} parent=0 // loop_header_branch
    %13 = sbr.rel (%p11) target = $region8
  $region5: #{bert_classifier_forward.13} parent=0 // loop_body
    %s15 = ssub.s32 %s10, 1
    %s16 = ssub.s32 %s10, 2
    %s23 = sadd.s32 1, %s18
    %p24 = scmp.ge.s32.totalorder %s23, 1
    %s25 = scalar_select %p24, 0, %s23
    %s26 = sadd.s32 1, %s17
    %s27 = scalar_select %p24, %s26, %s17
    %p28 = scmp.ge.s32.totalorder %s27, 2
    %s29 = scalar_select %p28, 0, %s27
    %s30 = ssub.s32 %s17, %s29
    %s31 = ssub.s32 %s18, %s25
    %s32 = sor.u32 %s30, %s31
    %p33 = scmp.eq.s32.totalorder %s32, 0
    %s35 = sadd.s32 %s34, 1
    %s36 = scalar_select %p33, %s34, %s35
    %p39 = pneg %p33
    %p40 = scmp.eq.s32.totalorder %s10, 1
    %p41 = por %p39, %p40
    %p42 = scmp.ne.s32.totalorder %s34, %s37
    %p43 = scmp.eq.s32.totalorder %s10, 0
    %p44 = por %p42, %p43
    %p45 = scmp.ne.s32.totalorder %s34, %s37
    %p46 = scmp.eq.s32.totalorder %s15, 1
    %p47 = por %p45, %p46
    %p48 = scmp.ne.s32.totalorder %s37, %s38
    %p49 = scmp.eq.s32.totalorder %s15, 0
    %p50 = por %p48, %p49
    %p51 = scmp.ne.s32.totalorder %s37, %s38
    %p52 = scmp.eq.s32.totalorder %s16, 1
    %p53 = por %p51, %p52
    %p55 = scmp.ne.s32.totalorder %s38, %s54
    %p56 = scmp.eq.s32.totalorder %s16, 0
    %p57 = por %p55, %p56
    %s58 = sadd.s32 %s18, 1
    %s59 = sadd.s32 %s25, 1
    %s60 = ssub.s32 %s17, %s29
    %s61 = ssub.s32 %s58, %s59
    %s62 = sor.u32 %s60, %s61
    %p63 = scmp.eq.s32.totalorder %s62, 0
    %s65 = sadd.s32 %s64, 1
    %s66 = scalar_select %p63, %s64, %s65
    %p69 = pneg %p63
    %p70 = scmp.eq.s32.totalorder %s10, 1
    %p71 = por %p69, %p70
    %p72 = scmp.ne.s32.totalorder %s64, %s67
    %p73 = scmp.eq.s32.totalorder %s10, 0
    %p74 = por %p72, %p73
    %p75 = scmp.ne.s32.totalorder %s64, %s67
    %p76 = scmp.eq.s32.totalorder %s15, 1
    %p77 = por %p75, %p76
    %p78 = scmp.ne.s32.totalorder %s67, %s68
    %p79 = scmp.eq.s32.totalorder %s15, 0
    %p80 = por %p78, %p79
    %p81 = scmp.ne.s32.totalorder %s67, %s68
    %p82 = scmp.eq.s32.totalorder %s16, 1
    %p83 = por %p81, %p82
    %p85 = scmp.ne.s32.totalorder %s68, %s84
    %p86 = scmp.eq.s32.totalorder %s16, 0
    %p87 = por %p85, %p86
    %s88 = sadd.s32 %s18, 2
    %s89 = sadd.s32 %s25, 2
    %s90 = ssub.s32 %s17, %s29
    %s91 = ssub.s32 %s88, %s89
    %s92 = sor.u32 %s90, %s91
    %p93 = scmp.eq.s32.totalorder %s92, 0
    %s95 = sadd.s32 %s94, 1
    %s96 = scalar_select %p93, %s94, %s95
    %p99 = pneg %p93
    %p100 = scmp.eq.s32.totalorder %s10, 1
    %p101 = por %p99, %p100
    %p102 = scmp.ne.s32.totalorder %s94, %s97
    %p103 = scmp.eq.s32.totalorder %s10, 0
    %p104 = por %p102, %p103
    %p105 = scmp.ne.s32.totalorder %s94, %s97
    %p106 = scmp.eq.s32.totalorder %s15, 1
    %p107 = por %p105, %p106
    %p108 = scmp.ne.s32.totalorder %s97, %s98
    %p109 = scmp.eq.s32.totalorder %s15, 0
    %p110 = por %p108, %p109
    %p111 = scmp.ne.s32.totalorder %s97, %s98
    %p112 = scmp.eq.s32.totalorder %s16, 1
    %p113 = por %p111, %p112
    %p115 = scmp.ne.s32.totalorder %s98, %s114
    %p116 = scmp.eq.s32.totalorder %s16, 0
    %p117 = por %p115, %p116
    %s118 = ssub.s32 %s17, %s29
    %p119 = scmp.eq.s32.totalorder %s118, 0
    %s121 = sadd.s32 %s120, 1
    %s122 = scalar_select %p119, %s120, %s121
    %p125 = pneg %p119
    %p126 = scmp.eq.s32.totalorder %s10, 1
    %p127 = por %p125, %p126
    %p128 = scmp.ne.s32.totalorder %s120, %s123
    %p129 = scmp.eq.s32.totalorder %s10, 0
    %p130 = por %p128, %p129
    %p131 = scmp.ne.s32.totalorder %s120, %s123
    %p132 = scmp.eq.s32.totalorder %s15, 1
    %p133 = por %p131, %p132
    %p134 = scmp.ne.s32.totalorder %s123, %s124
    %p135 = scmp.eq.s32.totalorder %s15, 0
    %p136 = por %p134, %p135
    %p137 = scmp.ne.s32.totalorder %s123, %s124
    %p138 = scmp.eq.s32.totalorder %s16, 1
    %p139 = por %p137, %p138
    %p141 = scmp.ne.s32.totalorder %s124, %s140
    %p142 = scmp.eq.s32.totalorder %s16, 0
    %p143 = por %p141, %p142
    %s144 = ssub.s32 %s17, %s29
    %s145 = ssub.s32 %s18, %s25
    %s146 = sor.u32 %s144, %s145
    %p147 = scmp.eq.s32.totalorder %s146, 0
    %s149 = sadd.s32 %s148, 1
    %s150 = scalar_select %p147, %s148, %s149
    %p153 = pneg %p147
    %p154 = scmp.eq.s32.totalorder %s10, 1
    %p155 = por %p153, %p154
    %p156 = scmp.ne.s32.totalorder %s148, %s151
    %p157 = scmp.eq.s32.totalorder %s10, 0
    %p158 = por %p156, %p157
    %p159 = scmp.ne.s32.totalorder %s148, %s151
    %p160 = scmp.eq.s32.totalorder %s15, 1
    %p161 = por %p159, %p160
    %p162 = scmp.ne.s32.totalorder %s151, %s152
    %p163 = scmp.eq.s32.totalorder %s15, 0
    %p164 = por %p162, %p163
    %p165 = scmp.ne.s32.totalorder %s151, %s152
    %p166 = scmp.eq.s32.totalorder %s16, 1
    %p167 = por %p165, %p166
    %p169 = scmp.ne.s32.totalorder %s152, %s168
    %p170 = scmp.eq.s32.totalorder %s16, 0
    %p171 = por %p169, %p170
    %p172 = scmp.le.s32.totalorder 1, %s10
    %p173 = scmp.lt.s32.totalorder %s10, 3
    %p174 = pnand %p172, %p173
    %p175 = pneg %p174
    // Predicated region
    $region9: #{bert_classifier_forward.13} parent=5 // pred_check
      _
    $region10: #{bert_classifier_forward.13} parent=5 // pred_check_branch
      %177 = sbr.rel (%p174) target = $region12
    $region11: #{bert_classifier_forward.13} parent=5 // pred_region
      %s178 = ssub.s32 %s10, 1
    $region12: #{bert_classifier_forward.13} parent=5 // pred_fallthru
      _
    %p179 = scmp.lt.s32.totalorder %s10, 2
    // Predicated region
    $region13: #{bert_classifier_forward.13} parent=5 // pred_check
      %p180 = pneg %p179
    $region14: #{bert_classifier_forward.13} parent=5 // pred_check_branch
      %182 = sbr.rel (%p180) target = $region16
    $region15: #{bert_classifier_forward.13} parent=5 // pred_region
      // Predicated region
      $region17: #{bert_classifier_forward.13} parent=15 // pred_check
        %p183 = pneg %p44
      $region18: #{bert_classifier_forward.13} parent=15 // pred_check_branch
        %185 = sbr.rel (%p183) target = $region20
      $region19: #{bert_classifier_forward.13} parent=15 // pred_region
        %p186 = scmp.lt.s32.totalorder %s17, 1
        %s187 = scalar_select %p186, %s17, 1
        %p188 = scmp.lt.s32.totalorder %s18, 2
        %s189 = scalar_select %p188, %s18, 2
        %s190 = smul.addr %s187, 3
        %s191 = sadd.s32 %s189, %s190
        %s192 = smul.addr %s191, 4
        %s193 = scalar_lea.vmem %s0, %s192
      $region20: #{bert_classifier_forward.13} parent=15 // pred_fallthru
        _
      // Predicated region
      $region21: #{bert_classifier_forward.13} parent=15 // pred_check
        %p194 = pneg %p74
      $region22: #{bert_classifier_forward.13} parent=15 // pred_check_branch
        %196 = sbr.rel (%p194) target = $region24
      $region23: #{bert_classifier_forward.13} parent=15 // pred_region
        %s197 = sadd.s32 %s18, 1
        %p198 = scmp.lt.s32.totalorder %s17, 1
        %s199 = scalar_select %p198, %s17, 1
        %p200 = scmp.lt.s32.totalorder %s197, 2
        %s201 = scalar_select %p200, %s197, 2
        %s202 = smul.addr %s199, 3
        %s203 = sadd.s32 %s201, %s202
        %s204 = smul.addr %s203, 4
        %s205 = scalar_lea.vmem %s1, %s204
        %s206 = sadd.s32 %s18, 1
      $region24: #{bert_classifier_forward.13} parent=15 // pred_fallthru
        _
      // Predicated region
      $region25: #{bert_classifier_forward.13} parent=15 // pred_check
        %p207 = pneg %p104
      $region26: #{bert_classifier_forward.13} parent=15 // pred_check_branch
        %209 = sbr.rel (%p207) target = $region28
      $region27: #{bert_classifier_forward.13} parent=15 // pred_region
        %s210 = sadd.s32 %s18, 2
        %p211 = scmp.lt.s32.totalorder %s17, 1
        %s212 = scalar_select %p211, %s17, 1
        %p213 = scmp.lt.s32.totalorder %s210, 2
        %s214 = scalar_select %p213, %s210, 2
        %s215 = smul.addr %s212, 3
        %s216 = sadd.s32 %s214, %s215
        %s217 = smul.addr %s216, 4
        %s218 = scalar_lea.vmem %s2, %s217
        %s219 = sadd.s32 %s18, 2
      $region28: #{bert_classifier_forward.13} parent=15 // pred_fallthru
        _
      // Predicated region
      $region29: #{bert_classifier_forward.13} parent=15 // pred_check
        %p220 = pneg %p130
      $region30: #{bert_classifier_forward.13} parent=15 // pred_check_branch
        %222 = sbr.rel (%p220) target = $region32
      $region31: #{bert_classifier_forward.13} parent=15 // pred_region
        %p223 = scmp.lt.s32.totalorder %s17, 1
        %s224 = scalar_select %p223, %s17, 1
        %s225 = scalar_lea.vmem %s3, %s224
      $region32: #{bert_classifier_forward.13} parent=15 // pred_fallthru
        _
    $region16: #{bert_classifier_forward.13} parent=5 // pred_fallthru
      _
    %p226 = scmp.le.s32.totalorder 1, %s10
    %p227 = scmp.lt.s32.totalorder %s10, 3
    %p228 = pnand %p226, %p227
    %p229 = pneg %p228
    // Predicated region
    $region33: #{bert_classifier_forward.13} parent=5 // pred_check
      _
    $region34: #{bert_classifier_forward.13} parent=5 // pred_check_branch
      %231 = sbr.rel (%p228) target = $region36
    $region35: #{bert_classifier_forward.13} parent=5 // pred_region
      %s232 = ssub.s32 %s10, 1
      %p233 = scmp.lt.s32.totalorder %s19, 1
      %s234 = scalar_select %p233, %s19, 1
      %p235 = scmp.lt.s32.totalorder %s20, 2
      %s236 = scalar_select %p235, %s20, 2
      %s237 = smul.addr %s234, 3
      %s238 = sadd.s32 %s236, %s237
      %s239 = smul.addr %s238, 4
      %s240 = scalar_lea.vmem %s0, %s239
      %p241 = pneg %p50
      %p242 = pneg %p47
      %s243 = sadd.s32 %s20, 1
      %p244 = scmp.lt.s32.totalorder %s19, 1
      %s245 = scalar_select %p244, %s19, 1
      %p246 = scmp.lt.s32.totalorder %s243, 2
      %s247 = scalar_select %p246, %s243, 2
      %s248 = smul.addr %s245, 3
      %s249 = sadd.s32 %s247, %s248
      %s250 = smul.addr %s249, 4
      %s251 = scalar_lea.vmem %s1, %s250
      %p252 = pneg %p80
      %p253 = pneg %p77
      %s254 = sadd.s32 %s20, 2
      %p255 = scmp.lt.s32.totalorder %s19, 1
      %s256 = scalar_select %p255, %s19, 1
      %p257 = scmp.lt.s32.totalorder %s254, 2
      %s258 = scalar_select %p257, %s254, 2
      %s259 = smul.addr %s256, 3
      %s260 = sadd.s32 %s258, %s259
      %s261 = smul.addr %s260, 4
      %s262 = scalar_lea.vmem %s2, %s261
      %p263 = pneg %p110
      %p264 = pneg %p107
      %p265 = scmp.lt.s32.totalorder %s19, 1
      %s266 = scalar_select %p265, %s19, 1
      %s267 = scalar_lea.vmem %s3, %s266
      %p268 = pneg %p136
      %p269 = pneg %p133
      %p270 = pneg %p164
      %p271 = pneg %p161
      %p272 = scmp.lt.s32.totalorder %s19, 1
      %s273 = scalar_select %p272, %s19, 1
      %p274 = scmp.lt.s32.totalorder %s20, 0
      %s275 = scalar_select %p274, %s20, 0
      %s276 = sadd.s32 %s275, %s273
      %s277 = smul.addr %s276, 4
      %s278 = scalar_lea.vmem %s4, %s277
      %p279 = scmp.lt.s32.totalorder %s19, 1
      %s280 = scalar_select %p279, %s19, 1
      %p281 = scmp.lt.s32.totalorder %s20, 2
      %s282 = scalar_select %p281, %s20, 2
      %s283 = smul.addr %s280, 3
      %s284 = sadd.s32 %s282, %s283
      %s285 = smul.addr %s284, 4
      %s286 = scalar_lea.vmem %s0, %s285
      %s287 = sadd.s32 %s20, 1
      %p288 = scmp.lt.s32.totalorder %s19, 1
      %s289 = scalar_select %p288, %s19, 1
      %p290 = scmp.lt.s32.totalorder %s287, 2
      %s291 = scalar_select %p290, %s287, 2
      %s292 = smul.addr %s289, 3
      %s293 = sadd.s32 %s291, %s292
      %s294 = smul.addr %s293, 4
      %s295 = scalar_lea.vmem %s1, %s294
      %s296 = sadd.s32 %s20, 1
      %s297 = sadd.s32 %s20, 2
      %p298 = scmp.lt.s32.totalorder %s19, 1
      %s299 = scalar_select %p298, %s19, 1
      %p300 = scmp.lt.s32.totalorder %s297, 2
      %s301 = scalar_select %p300, %s297, 2
      %s302 = smul.addr %s299, 3
      %s303 = sadd.s32 %s301, %s302
      %s304 = smul.addr %s303, 4
      %s305 = scalar_lea.vmem %s2, %s304
      %s306 = sadd.s32 %s20, 2
      %p307 = scmp.lt.s32.totalorder %s19, 1
      %s308 = scalar_select %p307, %s19, 1
      %s309 = scalar_lea.vmem %s3, %s308
      %p310 = scmp.lt.s32.totalorder %s19, 1
      %s311 = scalar_select %p310, %s19, 1
      %p312 = scmp.lt.s32.totalorder %s20, 0
      %s313 = scalar_select %p312, %s20, 0
      %s314 = sadd.s32 %s313, %s311
      %s315 = smul.addr %s314, 4
      %s316 = scalar_lea.vmem %s4, %s315
      %v319 = vld [vmem:[%s309] sm:$0x1]
      %v320 = vld [vmem:[%s286] sm:$0xf]
      %v321 = vmul.bf16 %v320, 1040203264
      %v322 = vld [vmem:[%s295] sm:$0xf]
      %v323 = vld [vmem:[%s305] sm:$0xf]
      %v325 = vlaneseq
      %v326 = vshrl.u32 %v325, 7
      %v327 = vsub.s32 0, %v326
      %v328 = vrot.slane %v319, %v327
      %vm330 = vcmask 523264
      %v332 = vsel %vm330, %v321, 0
      %v335 = vsel %vm330, %v322, 0
      %337 = vmatprep.subr.bf16.mxu0 0
      %338 = vmatpush1.bf16.xpose.msra.mxu0 0
      %339 = vmatprep.subr.bf16.mxu0 0
      %340 = vmatpush1.bf16.xpose.msra.mxu0 0
      %341 = vmatprep.subr.bf16.mxu0 0
      %342 = vmatpush1.bf16.xpose.msra.mxu0 0
      %343 = vmatprep.subr.bf16.mxu0 0
      %344 = vmatpush1.bf16.xpose.msra.mxu0 0
      %345 = vmatprep.subr.bf16.mxu0 0
      %346 = vmatpush1.bf16.xpose.msra.mxu0 0
      %347 = vmatprep.subr.bf16.mxu0 0
      %348 = vmatpush1.bf16.xpose.msra.mxu0 0
      %349 = vmatprep.subr.bf16.mxu0 0
      %350 = vmatpush1.bf16.xpose.msra.mxu0 0
      %351 = vmatprep.subr.bf16.mxu0 0
      %352 = vmatpush1.bf16.xpose.msra.mxu0 %v335
      %353 = vmatprep.subr.bf16.mxu0 0
      %354 = vmatpush2.bf16.xpose.msra.mxu0 0
      %355 = vmatprep.subr.bf16.mxu0 0
      %356 = vmatpush2.bf16.xpose.msra.mxu0 0
      %357 = vmatprep.subr.bf16.mxu0 0
      %358 = vmatpush2.bf16.xpose.msra.mxu0 0
      %359 = vmatprep.subr.bf16.mxu0 0
      %360 = vmatpush2.bf16.xpose.msra.mxu0 0
      %361 = vmatprep.subr.bf16.mxu0 0
      %362 = vmatpush2.bf16.xpose.msra.mxu0 0
      %363 = vmatprep.subr.bf16.mxu0 0
      %364 = vmatpush2.bf16.xpose.msra.mxu0 0
      %365 = vmatprep.subr.bf16.mxu0 0
      %366 = vmatpush2.bf16.xpose.msra.mxu0 0
      %367 = vmatprep.subr.bf16.mxu0 0
      %368 = vmatpush2.bf16.xpose.msra.mxu0 0
      %369 = vmatprep.mubr.bf16.mxu0 0
      %370 = vmatmul.mubr.bf16.gmra.mxu0 %v332
      %v371 = vpop.f32.mrf.mxu0
      %v372 = vadd.f32 %v328, %v371
      %v373 = vpop.f32.mrf.mxu0
      %v374 = vpop.f32.mrf.mxu0
      %v375 = vpop.f32.mrf.mxu0
      %376 = vdwg.mxu0
      %vm377 = vcmask 64512
      %v378 = vsel %vm377, %v372, -inf
      %379 = vmax.xlane.f32.xlu0 %v378
      %v380 = vpop.xlane.xlu0 %379
      %v381 = vsub.f32 %v372, %v380
      %v382 = vmul.f32 %v381, 1.442695
      %v383 = vpow.pop %v382
      %v384 = vsel %vm377, %v383, 0.0
      %385 = vadd.xlane.f32.xlu0 %v384
      %v386 = vpop.xlane.xlu0 %385
      %v387 = vrcp.pop %v386
      %v388 = vmul.f32 %v383, %v387
      %v389 = vpack.c.bf16 %v388, %v388
      %v391 = vsel %vm377, %v389, 0
      %vm393 = vcmask 1043456
      %v395 = vsel %vm393, %v323, 0
      %397 = vmatprep.subr.bf16.mxu0 0
      %398 = vmatpush1.bf16.msra.mxu0 0
      %399 = vmatprep.subr.bf16.mxu0 0
      %400 = vmatpush1.bf16.msra.mxu0 0
      %401 = vmatprep.subr.bf16.mxu0 0
      %402 = vmatpush1.bf16.msra.mxu0 0
      %403 = vmatprep.subr.bf16.mxu0 0
      %404 = vmatpush1.bf16.msra.mxu0 0
      %405 = vmatprep.subr.bf16.mxu0 0
      %406 = vmatpush1.bf16.msra.mxu0 0
      %407 = vmatprep.subr.bf16.mxu0 0
      %408 = vmatpush1.bf16.msra.mxu0 0
      %409 = vmatprep.subr.bf16.mxu0 0
      %410 = vmatpush1.bf16.msra.mxu0 0
      %411 = vmatprep.subr.bf16.mxu0 0
      %412 = vmatpush1.bf16.msra.mxu0 %v395
      %413 = vmatprep.subr.bf16.mxu0 0
      %414 = vmatpush2.bf16.msra.mxu0 0
      %415 = vmatprep.subr.bf16.mxu0 0
      %416 = vmatpush2.bf16.msra.mxu0 0
      %417 = vmatprep.subr.bf16.mxu0 0
      %418 = vmatpush2.bf16.msra.mxu0 0
      %419 = vmatprep.subr.bf16.mxu0 0
      %420 = vmatpush2.bf16.msra.mxu0 0
      %421 = vmatprep.subr.bf16.mxu0 0
      %422 = vmatpush2.bf16.msra.mxu0 0
      %423 = vmatprep.subr.bf16.mxu0 0
      %424 = vmatpush2.bf16.msra.mxu0 0
      %425 = vmatprep.subr.bf16.mxu0 0
      %426 = vmatpush2.bf16.msra.mxu0 0
      %427 = vmatprep.subr.bf16.mxu0 0
      %428 = vmatpush2.bf16.msra.mxu0 0
      %429 = vmatprep.mubr.bf16.mxu0 0
      %430 = vmatmul.mubr.bf16.gmra.mxu0 %v391
      %v431 = vpop.f32.mrf.mxu0
      %v432 = vadd.f32 0.0, %v431
      %v433 = vpop.f32.mrf.mxu0
      %v434 = vpop.f32.mrf.mxu0
      %v435 = vpop.f32.mrf.mxu0
      %436 = vdwg.mxu0
      %v438 = vunpack.c.l.b16 %v321
      %v439 = vpack.c.b16 %v438, %v438
      %440 = vrot.lane.b32.xlu0 %v439, 64
      %v441 = vpop.permute.xlu0 %440
      %v443 = vunpack.c.l.b16 %v322
      %v444 = vpack.c.b16 %v443, %v443
      %445 = vrot.lane.b32.xlu0 %v444, 64
      %v446 = vpop.permute.xlu0 %445
      %v448 = vsel %vm330, %v441, 0
      %v451 = vsel %vm330, %v446, 0
      %453 = vmatprep.subr.bf16.mxu0 0
      %454 = vmatpush1.bf16.xpose.msra.mxu0 0
      %455 = vmatprep.subr.bf16.mxu0 0
      %456 = vmatpush1.bf16.xpose.msra.mxu0 0
      %457 = vmatprep.subr.bf16.mxu0 0
      %458 = vmatpush1.bf16.xpose.msra.mxu0 0
      %459 = vmatprep.subr.bf16.mxu0 0
      %460 = vmatpush1.bf16.xpose.msra.mxu0 0
      %461 = vmatprep.subr.bf16.mxu0 0
      %462 = vmatpush1.bf16.xpose.msra.mxu0 0
      %463 = vmatprep.subr.bf16.mxu0 0
      %464 = vmatpush1.bf16.xpose.msra.mxu0 0
      %465 = vmatprep.subr.bf16.mxu0 0
      %466 = vmatpush1.bf16.xpose.msra.mxu0 0
      %467 = vmatprep.subr.bf16.mxu0 0
      %468 = vmatpush1.bf16.xpose.msra.mxu0 %v451
      %469 = vmatprep.subr.bf16.mxu0 0
      %470 = vmatpush2.bf16.xpose.msra.mxu0 0
      %471 = vmatprep.subr.bf16.mxu0 0
      %472 = vmatpush2.bf16.xpose.msra.mxu0 0
      %473 = vmatprep.subr.bf16.mxu0 0
      %474 = vmatpush2.bf16.xpose.msra.mxu0 0
      %475 = vmatprep.subr.bf16.mxu0 0
      %476 = vmatpush2.bf16.xpose.msra.mxu0 0
      %477 = vmatprep.subr.bf16.mxu0 0
      %478 = vmatpush2.bf16.xpose.msra.mxu0 0
      %479 = vmatprep.subr.bf16.mxu0 0
      %480 = vmatpush2.bf16.xpose.msra.mxu0 0
      %481 = vmatprep.subr.bf16.mxu0 0
      %482 = vmatpush2.bf16.xpose.msra.mxu0 0
      %483 = vmatprep.subr.bf16.mxu0 0
      %484 = vmatpush2.bf16.xpose.msra.mxu0 0
      %485 = vmatprep.mubr.bf16.mxu0 0
      %486 = vmatmul.mubr.bf16.gmra.mxu0 %v448
      %v487 = vpop.f32.mrf.mxu0
      %v488 = vadd.f32 %v328, %v487
      %v489 = vpop.f32.mrf.mxu0
      %v490 = vpop.f32.mrf.mxu0
      %v491 = vpop.f32.mrf.mxu0
      %492 = vdwg.mxu0
      %v493 = vsel %vm377, %v488, -inf
      %494 = vmax.xlane.f32.xlu0 %v493
      %v495 = vpop.xlane.xlu0 %494
      %v496 = vsub.f32 %v488, %v495
      %v497 = vmul.f32 %v496, 1.442695
      %v498 = vpow.pop %v497
      %v499 = vsel %vm377, %v498, 0.0
      %500 = vadd.xlane.f32.xlu0 %v499
      %v501 = vpop.xlane.xlu0 %500
      %v502 = vrcp.pop %v501
      %v503 = vmul.f32 %v498, %v502
      %v504 = vpack.c.bf16 %v503, %v503
      %v506 = vunpack.c.l.b16 %v323
      %v507 = vpack.c.b16 %v506, %v506
      %508 = vrot.lane.b32.xlu0 %v507, 64
      %v509 = vpop.permute.xlu0 %508
      %v511 = vsel %vm377, %v504, 0
      %v514 = vsel %vm393, %v509, 0
      %516 = vmatprep.subr.bf16.mxu0 0
      %517 = vmatpush1.bf16.msra.mxu0 0
      %518 = vmatprep.subr.bf16.mxu0 0
      %519 = vmatpush1.bf16.msra.mxu0 0
      %520 = vmatprep.subr.bf16.mxu0 0
      %521 = vmatpush1.bf16.msra.mxu0 0
      %522 = vmatprep.subr.bf16.mxu0 0
      %523 = vmatpush1.bf16.msra.mxu0 0
      %524 = vmatprep.subr.bf16.mxu0 0
      %525 = vmatpush1.bf16.msra.mxu0 0
      %526 = vmatprep.subr.bf16.mxu0 0
      %527 = vmatpush1.bf16.msra.mxu0 0
      %528 = vmatprep.subr.bf16.mxu0 0
      %529 = vmatpush1.bf16.msra.mxu0 0
      %530 = vmatprep.subr.bf16.mxu0 0
      %531 = vmatpush1.bf16.msra.mxu0 %v514
      %532 = vmatprep.subr.bf16.mxu0 0
      %533 = vmatpush2.bf16.msra.mxu0 0
      %534 = vmatprep.subr.bf16.mxu0 0
      %535 = vmatpush2.bf16.msra.mxu0 0
      %536 = vmatprep.subr.bf16.mxu0 0
      %537 = vmatpush2.bf16.msra.mxu0 0
      %538 = vmatprep.subr.bf16.mxu0 0
      %539 = vmatpush2.bf16.msra.mxu0 0
      %540 = vmatprep.subr.bf16.mxu0 0
      %541 = vmatpush2.bf16.msra.mxu0 0
      %542 = vmatprep.subr.bf16.mxu0 0
      %543 = vmatpush2.bf16.msra.mxu0 0
      %544 = vmatprep.subr.bf16.mxu0 0
      %545 = vmatpush2.bf16.msra.mxu0 0
      %546 = vmatprep.subr.bf16.mxu0 0
      %547 = vmatpush2.bf16.msra.mxu0 0
      %548 = vmatprep.mubr.bf16.mxu0 0
      %549 = vmatmul.mubr.bf16.gmra.mxu0 %v511
      %v550 = vpop.f32.mrf.mxu0
      %v551 = vadd.f32 0.0, %v550
      %v552 = vpop.f32.mrf.mxu0
      %v553 = vpop.f32.mrf.mxu0
      %v554 = vpop.f32.mrf.mxu0
      %555 = vdwg.mxu0
      %557 = vrot.lane.b32.xlu0 %v551, 64
      %v558 = vpop.permute.xlu0 %557
      %v560 = vsel %vm330, %v432, %v558
      %v561 = vpack.c.bf16 %v560, %v560
      %562 = vst [vmem:[%s316] sm:$0xf] %v561
      %p563 = scmp.lt.s32.totalorder %s19, 1
      %s564 = scalar_select %p563, %s19, 1
      %p565 = scmp.lt.s32.totalorder %s20, 0
      %s566 = scalar_select %p565, %s20, 0
      %s567 = sadd.s32 %s566, %s564
      %s568 = smul.addr %s567, 4
      %s569 = scalar_lea.vmem %s4, %s568
      // Predicated region
      $region37: #{bert_classifier_forward.13} parent=35 // pred_check
        %p570 = pneg %p161
      $region38: #{bert_classifier_forward.13} parent=35 // pred_check_branch
        %572 = sbr.rel (%p570) target = $region40
      $region39: #{bert_classifier_forward.13} parent=35 // pred_region
        _
      $region40: #{bert_classifier_forward.13} parent=35 // pred_fallthru
        _
    $region36: #{bert_classifier_forward.13} parent=5 // pred_fallthru
      _
    %p573 = scmp.le.s32.totalorder 2, %s10
    // Predicated region
    $region41: #{bert_classifier_forward.13} parent=5 // pred_check
      %p574 = pneg %p573
    $region42: #{bert_classifier_forward.13} parent=5 // pred_check_branch
      %576 = sbr.rel (%p574) target = $region44
    $region43: #{bert_classifier_forward.13} parent=5 // pred_region
      %s577 = ssub.s32 %s10, 2
      // Predicated region
      $region45: #{bert_classifier_forward.13} parent=43 // pred_check
        %p578 = pneg %p167
      $region46: #{bert_classifier_forward.13} parent=43 // pred_check_branch
        %580 = sbr.rel (%p578) target = $region48
      $region47: #{bert_classifier_forward.13} parent=43 // pred_region
        %p581 = scmp.lt.s32.totalorder %s21, 1
        %s582 = scalar_select %p581, %s21, 1
        %p583 = scmp.lt.s32.totalorder %s22, 0
        %s584 = scalar_select %p583, %s22, 0
        %s585 = sadd.s32 %s584, %s582
        %s586 = smul.addr %s585, 4
        %s587 = scalar_lea.vmem %s4, %s586
      $region48: #{bert_classifier_forward.13} parent=43 // pred_fallthru
        _
    $region44: #{bert_classifier_forward.13} parent=5 // pred_fallthru
      _
  $region6: #{bert_classifier_forward.13} parent=0 // loop_footer
    %s14 = sadd.s32 1, %s10
  $region7: #{bert_classifier_forward.13} parent=0 // loop_footer_branch
    %9 = sbr.rel target = $region3
  $region8: #{bert_classifier_forward.13} parent=0 // loop_exit
    _

// kernel: bert_classifier_forward.12
$region0: #{bert_classifier_forward.12}
  #allocation0 [shape = 'u32[]', space=smem, size = 0x4, offset = 0x4, fixed_abs, tag = 'smem constant byte address 0x4 - core index']
  #allocation1 [shape = 'u32[144,128]{1,0:T(1,128)}', space=vmem, size = 0x12000, scoped, tag = 'internal scratch']
  %s0 = inlined_call_operand.vmem [shape: bf16[16,128], index: 0, kind: input, shape index: {}]
  %s1 = inlined_call_operand.vmem [shape: bf16[128,384], index: 1, kind: input, shape index: {}]
  %s2 = inlined_call_operand.vmem [shape: f32[1,384], index: 2, kind: input, shape index: {}]
  %s3 = inlined_call_operand.vmem [shape: bf16[16,384], index: 3, kind: output, shape index: {}]
  %s4 = sld [smem:[#allocation0]]
  $region22: #{bert_classifier_forward.12} parent=0
    _
  %s6 = ssub.s32 1, %s4
  %s7 = scalar_select 0, %s6, %s4
  // Predicated region
  $region2: #{bert_classifier_forward.12} parent=0 // pred_check
    _
  $region3: #{bert_classifier_forward.12} parent=0 // pred_check_branch
    %9 = sbr.rel (0) target = $region5
  $region4: #{bert_classifier_forward.12} parent=0 // pred_region
    _
  $region5: #{bert_classifier_forward.12} parent=0 // pred_fallthru
    _
  // Predicated region
  $region6: #{bert_classifier_forward.12} parent=0 // pred_check
    _
  $region7: #{bert_classifier_forward.12} parent=0 // pred_check_branch
    %11 = sbr.rel (0) target = $region9
  $region8: #{bert_classifier_forward.12} parent=0 // pred_region
    _
  $region9: #{bert_classifier_forward.12} parent=0 // pred_fallthru
    _
  // Predicated region
  $region10: #{bert_classifier_forward.12} parent=0 // pred_check
    _
  $region11: #{bert_classifier_forward.12} parent=0 // pred_check_branch
    %13 = sbr.rel (0) target = $region13
  $region12: #{bert_classifier_forward.12} parent=0 // pred_region
    _
  $region13: #{bert_classifier_forward.12} parent=0 // pred_fallthru
    _
  %v15 = vld [vmem:[%s0] sm:$0xf]
  %v16 = vld [vmem:[%s0 + $0x4] sm:$0xf]
  %v17 = vld [vmem:[%s1] sm:$0xff]
  %v18 = vld [vmem:[%s1 + $0x8] sm:$0xf]
  %v19 = vld [vmem:[%s1 + $0xc] sm:$0xff]
  %v20 = vld [vmem:[%s1 + $0x14] sm:$0xf]
  %v21 = vld [vmem:[%s1 + $0x18] sm:$0xff]
  %v22 = vld [vmem:[%s1 + $0x20] sm:$0xf]
  %v23 = vld [vmem:[%s1 + $0x24] sm:$0xff]
  %v24 = vld [vmem:[%s1 + $0x2c] sm:$0xf]
  %v25 = vld [vmem:[%s1 + $0x30] sm:$0xff]
  %v26 = vld [vmem:[%s1 + $0x38] sm:$0xf]
  %v27 = vld [vmem:[%s1 + $0x3c] sm:$0xff]
  %v28 = vld [vmem:[%s1 + $0x44] sm:$0xf]
  %v29 = vld [vmem:[%s1 + $0x48] sm:$0xff]
  %v30 = vld [vmem:[%s1 + $0x50] sm:$0xf]
  %v31 = vld [vmem:[%s1 + $0x54] sm:$0xff]
  %v32 = vld [vmem:[%s1 + $0x5c] sm:$0xf]
  %v33 = vld [vmem:[%s1 + $0x60] sm:$0xff]
  %v34 = vld [vmem:[%s1 + $0x68] sm:$0xf]
  %v35 = vld [vmem:[%s1 + $0x6c] sm:$0xff]
  %v36 = vld [vmem:[%s1 + $0x74] sm:$0xf]
  %v37 = vld [vmem:[%s1 + $0x78] sm:$0xff]
  %v38 = vld [vmem:[%s1 + $0x80] sm:$0xf]
  %v39 = vld [vmem:[%s1 + $0x84] sm:$0xff]
  %v40 = vld [vmem:[%s1 + $0x8c] sm:$0xf]
  %v41 = vld [vmem:[%s1 + $0x90] sm:$0xff]
  %v42 = vld [vmem:[%s1 + $0x98] sm:$0xf]
  %v43 = vld [vmem:[%s1 + $0x9c] sm:$0xff]
  %v44 = vld [vmem:[%s1 + $0xa4] sm:$0xf]
  %v45 = vld [vmem:[%s1 + $0xa8] sm:$0xff]
  %v46 = vld [vmem:[%s1 + $0xb0] sm:$0xf]
  %v47 = vld [vmem:[%s1 + $0xb4] sm:$0xff]
  %v48 = vld [vmem:[%s1 + $0xbc] sm:$0xf]
  %v49 = vld [vmem:[%s2] sm:$0x7]
  %v51 = vlaneseq
  %v52 = vshrl.u32 %v51, 7
  %v53 = vsub.s32 0, %v52
  %v54 = vrot.slane %v49, %v53
  %v55 = vlaneseq
  %v56 = vshrl.u32 %v55, 7
  %v57 = vsub.s32 1, %v56
  %v58 = vrot.slane %v49, %v57
  %v59 = vlaneseq
  %v60 = vshrl.u32 %v59, 7
  %v61 = vsub.s32 2, %v60
  %v62 = vrot.slane %v49, %v61
  %v68 = vunpack.c.l.b16 %v15
  %v69 = vunpack.c.l.b16 %v16
  %v70 = vpack.c.b16 %v69, %v68
  %v104 = vunpack.c.l.b16 %v17
  %v105 = vunpack.c.h.b16 %v17
  %v106 = vunpack.c.l.b16 %v18
  %v107 = vunpack.c.l.b16 %v19
  %v108 = vunpack.c.h.b16 %v19
  %v109 = vunpack.c.l.b16 %v20
  %v110 = vunpack.c.l.b16 %v21
  %v111 = vunpack.c.h.b16 %v21
  %v112 = vunpack.c.l.b16 %v22
  %v113 = vunpack.c.l.b16 %v23
  %v114 = vunpack.c.h.b16 %v23
  %v115 = vunpack.c.l.b16 %v24
  %v116 = vunpack.c.l.b16 %v25
  %v117 = vunpack.c.h.b16 %v25
  %v118 = vunpack.c.l.b16 %v26
  %v119 = vunpack.c.l.b16 %v27
  %v120 = vunpack.c.h.b16 %v27
  %v121 = vunpack.c.l.b16 %v28
  %v122 = vunpack.c.l.b16 %v29
  %v123 = vunpack.c.h.b16 %v29
  %v124 = vunpack.c.l.b16 %v30
  %v125 = vunpack.c.l.b16 %v31
  %v126 = vunpack.c.h.b16 %v31
  %v127 = vunpack.c.l.b16 %v32
  %v128 = vunpack.c.l.b16 %v33
  %v129 = vunpack.c.h.b16 %v33
  %v130 = vunpack.c.l.b16 %v34
  %v131 = vunpack.c.l.b16 %v35
  %v132 = vunpack.c.h.b16 %v35
  %v133 = vunpack.c.l.b16 %v36
  %v134 = vunpack.c.l.b16 %v37
  %v135 = vunpack.c.h.b16 %v37
  %v136 = vunpack.c.l.b16 %v38
  %v137 = vunpack.c.l.b16 %v39
  %v138 = vunpack.c.h.b16 %v39
  %v139 = vunpack.c.l.b16 %v40
  %v140 = vunpack.c.l.b16 %v41
  %v141 = vunpack.c.h.b16 %v41
  %v142 = vunpack.c.l.b16 %v42
  %v143 = vunpack.c.l.b16 %v43
  %v144 = vunpack.c.h.b16 %v43
  %v145 = vunpack.c.l.b16 %v44
  %v146 = vunpack.c.l.b16 %v45
  %v147 = vunpack.c.h.b16 %v45
  %v148 = vunpack.c.l.b16 %v46
  %v149 = vunpack.c.l.b16 %v47
  %v150 = vunpack.c.h.b16 %v47
  %v151 = vunpack.c.l.b16 %v48
  %v152 = vpack.c.b16 %v107, %v104
  %v153 = vpack.c.b16 %v108, %v105
  %v154 = vpack.c.b16 %v109, %v106
  %v155 = vpack.c.b16 %v113, %v110
  %v156 = vpack.c.b16 %v114, %v111
  %v157 = vpack.c.b16 %v115, %v112
  %v158 = vpack.c.b16 %v119, %v116
  %v159 = vpack.c.b16 %v120, %v117
  %v160 = vpack.c.b16 %v121, %v118
  %v161 = vpack.c.b16 %v125, %v122
  %v162 = vpack.c.b16 %v126, %v123
  %v163 = vpack.c.b16 %v127, %v124
  %v164 = vpack.c.b16 %v131, %v128
  %v165 = vpack.c.b16 %v132, %v129
  %v166 = vpack.c.b16 %v133, %v130
  %v167 = vpack.c.b16 %v137, %v134
  %v168 = vpack.c.b16 %v138, %v135
  %v169 = vpack.c.b16 %v139, %v136
  %v170 = vpack.c.b16 %v143, %v140
  %v171 = vpack.c.b16 %v144, %v141
  %v172 = vpack.c.b16 %v145, %v142
  %v173 = vpack.c.b16 %v149, %v146
  %v174 = vpack.c.b16 %v150, %v147
  %v175 = vpack.c.b16 %v151, %v148
  %200 = vmatprep.subr.bf16.mxu0 %v174
  %201 = vmatpush1.bf16.msra.mxu0 %v173
  %202 = vmatprep.subr.bf16.mxu0 %v171
  %203 = vmatpush1.bf16.msra.mxu0 %v170
  %204 = vmatprep.subr.bf16.mxu0 %v168
  %205 = vmatpush1.bf16.msra.mxu0 %v167
  %206 = vmatprep.subr.bf16.mxu0 %v165
  %207 = vmatpush1.bf16.msra.mxu0 %v164
  %208 = vmatprep.subr.bf16.mxu0 %v162
  %209 = vmatpush1.bf16.msra.mxu0 %v161
  %210 = vmatprep.subr.bf16.mxu0 %v159
  %211 = vmatpush1.bf16.msra.mxu0 %v158
  %212 = vmatprep.subr.bf16.mxu0 %v156
  %213 = vmatpush1.bf16.msra.mxu0 %v155
  %214 = vmatprep.subr.bf16.mxu0 %v153
  %215 = vmatpush1.bf16.msra.mxu0 %v152
  %216 = vmatprep.subr.bf16.mxu0 0
  %217 = vmatpush2.bf16.msra.mxu0 0
  %218 = vmatprep.subr.bf16.mxu0 0
  %219 = vmatpush2.bf16.msra.mxu0 0
  %220 = vmatprep.subr.bf16.mxu0 0
  %221 = vmatpush2.bf16.msra.mxu0 0
  %222 = vmatprep.subr.bf16.mxu0 0
  %223 = vmatpush2.bf16.msra.mxu0 0
  %224 = vmatprep.subr.bf16.mxu0 0
  %225 = vmatpush2.bf16.msra.mxu0 0
  %226 = vmatprep.subr.bf16.mxu0 0
  %227 = vmatpush2.bf16.msra.mxu0 0
  %228 = vmatprep.subr.bf16.mxu0 0
  %229 = vmatpush2.bf16.msra.mxu0 0
  %230 = vmatprep.subr.bf16.mxu0 0
  %231 = vmatpush2.bf16.msra.mxu0 0
  %232 = vmatprep.mubr.bf16.mxu0 0
  %233 = vmatmul.mubr.bf16.gmra.mxu0 %v70
  %v234 = vpop.f32.mrf.mxu0
  %v235 = vadd.f32 %v54, %v234
  %v236 = vpop.f32.mrf.mxu0
  %v237 = vadd.f32 %v58, %v236
  %v238 = vpop.f32.mrf.mxu0
  %v239 = vadd.f32 %v54, %v238
  %v240 = vpop.f32.mrf.mxu0
  %v241 = vadd.f32 %v58, %v240
  %242 = vdwg.mxu0
  %243 = vmatprep.subr.bf16.mxu0 0
  %244 = vmatpush1.bf16.msra.mxu0 %v175
  %245 = vmatprep.subr.bf16.mxu0 0
  %246 = vmatpush1.bf16.msra.mxu0 %v172
  %247 = vmatprep.subr.bf16.mxu0 0
  %248 = vmatpush1.bf16.msra.mxu0 %v169
  %249 = vmatprep.subr.bf16.mxu0 0
  %250 = vmatpush1.bf16.msra.mxu0 %v166
  %251 = vmatprep.subr.bf16.mxu0 0
  %252 = vmatpush1.bf16.msra.mxu0 %v163
  %253 = vmatprep.subr.bf16.mxu0 0
  %254 = vmatpush1.bf16.msra.mxu0 %v160
  %255 = vmatprep.subr.bf16.mxu0 0
  %256 = vmatpush1.bf16.msra.mxu0 %v157
  %257 = vmatprep.subr.bf16.mxu0 0
  %258 = vmatpush1.bf16.msra.mxu0 %v154
  %259 = vmatprep.subr.bf16.mxu0 0
  %260 = vmatpush2.bf16.msra.mxu0 0
  %261 = vmatprep.subr.bf16.mxu0 0
  %262 = vmatpush2.bf16.msra.mxu0 0
  %263 = vmatprep.subr.bf16.mxu0 0
  %264 = vmatpush2.bf16.msra.mxu0 0
  %265 = vmatprep.subr.bf16.mxu0 0
  %266 = vmatpush2.bf16.msra.mxu0 0
  %267 = vmatprep.subr.bf16.mxu0 0
  %268 = vmatpush2.bf16.msra.mxu0 0
  %269 = vmatprep.subr.bf16.mxu0 0
  %270 = vmatpush2.bf16.msra.mxu0 0
  %271 = vmatprep.subr.bf16.mxu0 0
  %272 = vmatpush2.bf16.msra.mxu0 0
  %273 = vmatprep.subr.bf16.mxu0 0
  %274 = vmatpush2.bf16.msra.mxu0 0
  %275 = vmatprep.mubr.bf16.mxu0 0
  %276 = vmatmul.mubr.bf16.gmra.mxu0 %v70
  %v277 = vpop.f32.mrf.mxu0
  %v278 = vadd.f32 %v62, %v277
  %v279 = vpop.f32.mrf.mxu0
  %v280 = vpop.f32.mrf.mxu0
  %v281 = vadd.f32 %v62, %v280
  %v282 = vpop.f32.mrf.mxu0
  %283 = vdwg.mxu0
  %v284 = vpack.c.bf16 %v239, %v235
  %v285 = vpack.c.bf16 %v241, %v237
  %v286 = vpack.c.bf16 %v281, %v278
  %v290 = vunpack.c.l.b16 %v284
  %v291 = vunpack.c.l.b16 %v285
  %v292 = vunpack.c.l.b16 %v286
  %v293 = vunpack.c.h.b16 %v284
  %v294 = vunpack.c.h.b16 %v285
  %v295 = vunpack.c.h.b16 %v286
  %v296 = vpack.c.b16 %v291, %v290
  %v297 = vpack.c.b16 %v292, %v292
  %v298 = vpack.c.b16 %v294, %v293
  %v299 = vpack.c.b16 %v295, %v295
  %304 = vst [vmem:[%s3] sm:$0xff] %v296
  %305 = vst [vmem:[%s3 + $0x8] sm:$0xf] %v297
  %306 = vst [vmem:[%s3 + $0xc] sm:$0xff] %v298
  %307 = vst [vmem:[%s3 + $0x14] sm:$0xf] %v299
  // Predicated region
  $region14: #{bert_classifier_forward.12} parent=0 // pred_check
    _
  $region15: #{bert_classifier_forward.12} parent=0 // pred_check_branch
    %309 = sbr.rel (0) target = $region17
  $region16: #{bert_classifier_forward.12} parent=0 // pred_region
    _
  $region17: #{bert_classifier_forward.12} parent=0 // pred_fallthru
    _
  // Predicated region
  $region18: #{bert_classifier_forward.12} parent=0 // pred_check
    _
  $region19: #{bert_classifier_forward.12} parent=0 // pred_check_branch
    %311 = sbr.rel (0) target = $region21
  $region20: #{bert_classifier_forward.12} parent=0 // pred_region
    _
  $region21: #{bert_classifier_forward.12} parent=0 // pred_fallthru
    _

// kernel: bert_classifier_forward.15
$region0: #{bert_classifier_forward.15}
  #allocation0 [shape = 'u32[]', space=smem, size = 0x4, offset = 0x4, fixed_abs, tag = 'smem constant byte address 0x4 - core index']
  #allocation1 [shape = 'u32[144,128]{1,0:T(1,128)}', space=vmem, size = 0x12000, scoped, tag = 'internal scratch']
  %s0 = inlined_call_operand.vmem [shape: bf16[16,128], index: 0, kind: input, shape index: {}]
  %s1 = inlined_call_operand.vmem [shape: bf16[128,256], index: 1, kind: input, shape index: {}]
  %s2 = inlined_call_operand.vmem [shape: f32[1,256], index: 2, kind: input, shape index: {}]
  %s3 = inlined_call_operand.vmem [shape: bf16[16,256], index: 3, kind: output, shape index: {}]
  %s4 = sld [smem:[#allocation0]]
  $region22: #{bert_classifier_forward.15} parent=0
    _
  %s6 = ssub.s32 1, %s4
  %s7 = scalar_select 0, %s6, %s4
  // Predicated region
  $region2: #{bert_classifier_forward.15} parent=0 // pred_check
    _
  $region3: #{bert_classifier_forward.15} parent=0 // pred_check_branch
    %9 = sbr.rel (0) target = $region5
  $region4: #{bert_classifier_forward.15} parent=0 // pred_region
    _
  $region5: #{bert_classifier_forward.15} parent=0 // pred_fallthru
    _
  // Predicated region
  $region6: #{bert_classifier_forward.15} parent=0 // pred_check
    _
  $region7: #{bert_classifier_forward.15} parent=0 // pred_check_branch
    %11 = sbr.rel (0) target = $region9
  $region8: #{bert_classifier_forward.15} parent=0 // pred_region
    _
  $region9: #{bert_classifier_forward.15} parent=0 // pred_fallthru
    _
  // Predicated region
  $region10: #{bert_classifier_forward.15} parent=0 // pred_check
    _
  $region11: #{bert_classifier_forward.15} parent=0 // pred_check_branch
    %13 = sbr.rel (0) target = $region13
  $region12: #{bert_classifier_forward.15} parent=0 // pred_region
    _
  $region13: #{bert_classifier_forward.15} parent=0 // pred_fallthru
    _
  %v15 = vld [vmem:[%s0] sm:$0xf]
  %v16 = vld [vmem:[%s0 + $0x4] sm:$0xf]
  %v17 = vld [vmem:[%s1] sm:$0xff]
  %v18 = vld [vmem:[%s1 + $0x8] sm:$0xff]
  %v19 = vld [vmem:[%s1 + $0x10] sm:$0xff]
  %v20 = vld [vmem:[%s1 + $0x18] sm:$0xff]
  %v21 = vld [vmem:[%s1 + $0x20] sm:$0xff]
  %v22 = vld [vmem:[%s1 + $0x28] sm:$0xff]
  %v23 = vld [vmem:[%s1 + $0x30] sm:$0xff]
  %v24 = vld [vmem:[%s1 + $0x38] sm:$0xff]
  %v25 = vld [vmem:[%s1 + $0x40] sm:$0xff]
  %v26 = vld [vmem:[%s1 + $0x48] sm:$0xff]
  %v27 = vld [vmem:[%s1 + $0x50] sm:$0xff]
  %v28 = vld [vmem:[%s1 + $0x58] sm:$0xff]
  %v29 = vld [vmem:[%s1 + $0x60] sm:$0xff]
  %v30 = vld [vmem:[%s1 + $0x68] sm:$0xff]
  %v31 = vld [vmem:[%s1 + $0x70] sm:$0xff]
  %v32 = vld [vmem:[%s1 + $0x78] sm:$0xff]
  %v33 = vld [vmem:[%s2] sm:$0x3]
  %v35 = vlaneseq
  %v36 = vshrl.u32 %v35, 7
  %v37 = vsub.s32 0, %v36
  %v38 = vrot.slane %v33, %v37
  %v39 = vlaneseq
  %v40 = vshrl.u32 %v39, 7
  %v41 = vsub.s32 1, %v40
  %v42 = vrot.slane %v33, %v41
  %v47 = vunpack.c.l.b16 %v15
  %v48 = vunpack.c.l.b16 %v16
  %v49 = vpack.c.b16 %v48, %v47
  %v67 = vunpack.c.l.b16 %v17
  %v68 = vunpack.c.h.b16 %v17
  %v69 = vunpack.c.l.b16 %v18
  %v70 = vunpack.c.h.b16 %v18
  %v71 = vunpack.c.l.b16 %v19
  %v72 = vunpack.c.h.b16 %v19
  %v73 = vunpack.c.l.b16 %v20
  %v74 = vunpack.c.h.b16 %v20
  %v75 = vunpack.c.l.b16 %v21
  %v76 = vunpack.c.h.b16 %v21
  %v77 = vunpack.c.l.b16 %v22
  %v78 = vunpack.c.h.b16 %v22
  %v79 = vunpack.c.l.b16 %v23
  %v80 = vunpack.c.h.b16 %v23
  %v81 = vunpack.c.l.b16 %v24
  %v82 = vunpack.c.h.b16 %v24
  %v83 = vunpack.c.l.b16 %v25
  %v84 = vunpack.c.h.b16 %v25
  %v85 = vunpack.c.l.b16 %v26
  %v86 = vunpack.c.h.b16 %v26
  %v87 = vunpack.c.l.b16 %v27
  %v88 = vunpack.c.h.b16 %v27
  %v89 = vunpack.c.l.b16 %v28
  %v90 = vunpack.c.h.b16 %v28
  %v91 = vunpack.c.l.b16 %v29
  %v92 = vunpack.c.h.b16 %v29
  %v93 = vunpack.c.l.b16 %v30
  %v94 = vunpack.c.h.b16 %v30
  %v95 = vunpack.c.l.b16 %v31
  %v96 = vunpack.c.h.b16 %v31
  %v97 = vunpack.c.l.b16 %v32
  %v98 = vunpack.c.h.b16 %v32
  %v99 = vpack.c.b16 %v69, %v67
  %v100 = vpack.c.b16 %v70, %v68
  %v101 = vpack.c.b16 %v73, %v71
  %v102 = vpack.c.b16 %v74, %v72
  %v103 = vpack.c.b16 %v77, %v75
  %v104 = vpack.c.b16 %v78, %v76
  %v105 = vpack.c.b16 %v81, %v79
  %v106 = vpack.c.b16 %v82, %v80
  %v107 = vpack.c.b16 %v85, %v83
  %v108 = vpack.c.b16 %v86, %v84
  %v109 = vpack.c.b16 %v89, %v87
  %v110 = vpack.c.b16 %v90, %v88
  %v111 = vpack.c.b16 %v93, %v91
  %v112 = vpack.c.b16 %v94, %v92
  %v113 = vpack.c.b16 %v97, %v95
  %v114 = vpack.c.b16 %v98, %v96
  %131 = vmatprep.subr.bf16.mxu0 %v114
  %132 = vmatpush1.bf16.msra.mxu0 %v113
  %133 = vmatprep.subr.bf16.mxu0 %v112
  %134 = vmatpush1.bf16.msra.mxu0 %v111
  %135 = vmatprep.subr.bf16.mxu0 %v110
  %136 = vmatpush1.bf16.msra.mxu0 %v109
  %137 = vmatprep.subr.bf16.mxu0 %v108
  %138 = vmatpush1.bf16.msra.mxu0 %v107
  %139 = vmatprep.subr.bf16.mxu0 %v106
  %140 = vmatpush1.bf16.msra.mxu0 %v105
  %141 = vmatprep.subr.bf16.mxu0 %v104
  %142 = vmatpush1.bf16.msra.mxu0 %v103
  %143 = vmatprep.subr.bf16.mxu0 %v102
  %144 = vmatpush1.bf16.msra.mxu0 %v101
  %145 = vmatprep.subr.bf16.mxu0 %v100
  %146 = vmatpush1.bf16.msra.mxu0 %v99
  %147 = vmatprep.subr.bf16.mxu0 0
  %148 = vmatpush2.bf16.msra.mxu0 0
  %149 = vmatprep.subr.bf16.mxu0 0
  %150 = vmatpush2.bf16.msra.mxu0 0
  %151 = vmatprep.subr.bf16.mxu0 0
  %152 = vmatpush2.bf16.msra.mxu0 0
  %153 = vmatprep.subr.bf16.mxu0 0
  %154 = vmatpush2.bf16.msra.mxu0 0
  %155 = vmatprep.subr.bf16.mxu0 0
  %156 = vmatpush2.bf16.msra.mxu0 0
  %157 = vmatprep.subr.bf16.mxu0 0
  %158 = vmatpush2.bf16.msra.mxu0 0
  %159 = vmatprep.subr.bf16.mxu0 0
  %160 = vmatpush2.bf16.msra.mxu0 0
  %161 = vmatprep.subr.bf16.mxu0 0
  %162 = vmatpush2.bf16.msra.mxu0 0
  %163 = vmatprep.mubr.bf16.mxu0 0
  %164 = vmatmul.mubr.bf16.gmra.mxu0 %v49
  %v165 = vpop.f32.mrf.mxu0
  %v166 = vadd.f32 %v38, %v165
  %v167 = vpop.f32.mrf.mxu0
  %v168 = vadd.f32 %v42, %v167
  %v169 = vpop.f32.mrf.mxu0
  %v170 = vadd.f32 %v38, %v169
  %v171 = vpop.f32.mrf.mxu0
  %v172 = vadd.f32 %v42, %v171
  %173 = vdwg.mxu0
  %v174 = vmul.f32 %v166, 0.5
  %v175 = vmul.f32 %v168, 0.5
  %v176 = vmul.f32 %v170, 0.5
  %v177 = vmul.f32 %v172, 0.5
  %v178 = vmul.f32 %v166, 0.70710677
  %v179 = vmul.f32 %v168, 0.70710677
  %v180 = vmul.f32 %v170, 0.70710677
  %v181 = vmul.f32 %v172, 0.70710677
  %v182 = verf.f32.pop %v178
  %v183 = verf.f32.pop %v179
  %v184 = verf.f32.pop %v180
  %v185 = verf.f32.pop %v181
  %v186 = vadd.f32 %v182, 1.0
  %v187 = vadd.f32 %v183, 1.0
  %v188 = vadd.f32 %v184, 1.0
  %v189 = vadd.f32 %v185, 1.0
  %v190 = vmul.f32 %v174, %v186
  %v191 = vmul.f32 %v175, %v187
  %v192 = vmul.f32 %v176, %v188
  %v193 = vmul.f32 %v177, %v189
  %v194 = vpack.c.bf16 %v192, %v190
  %v195 = vpack.c.bf16 %v193, %v191
  %v198 = vunpack.c.l.b16 %v194
  %v199 = vunpack.c.l.b16 %v195
  %v200 = vunpack.c.h.b16 %v194
  %v201 = vunpack.c.h.b16 %v195
  %v202 = vpack.c.b16 %v199, %v198
  %v203 = vpack.c.b16 %v201, %v200
  %206 = vst [vmem:[%s3] sm:$0xff] %v202
  %207 = vst [vmem:[%s3 + $0x8] sm:$0xff] %v203
  // Predicated region
  $region14: #{bert_classifier_forward.15} parent=0 // pred_check
    _
  $region15: #{bert_classifier_forward.15} parent=0 // pred_check_branch
    %209 = sbr.rel (0) target = $region17
  $region16: #{bert_classifier_forward.15} parent=0 // pred_region
    _
  $region17: #{bert_classifier_forward.15} parent=0 // pred_fallthru
    _
  // Predicated region
  $region18: #{bert_classifier_forward.15} parent=0 // pred_check
    _
  $region19: #{bert_classifier_forward.15} parent=0 // pred_check_branch
    %211 = sbr.rel (0) target = $region21
  $region20: #{bert_classifier_forward.15} parent=0 // pred_region
    _
  $region21: #{bert_classifier_forward.15} parent=0 // pred_fallthru
    _

// kernel: bert_classifier_forward.16
$region0: #{bert_classifier_forward.16}
  #allocation0 [shape = 'u32[]', space=smem, size = 0x4, offset = 0x4, fixed_abs, tag = 'smem constant byte address 0x4 - core index']
  #allocation1 [shape = 'u32[144,128]{1,0:T(1,128)}', space=vmem, size = 0x12000, scoped, tag = 'internal scratch']
  %s0 = inlined_call_operand.vmem [shape: bf16[16,256], index: 0, kind: input, shape index: {}]
  %s1 = inlined_call_operand.vmem [shape: bf16[256,128], index: 1, kind: input, shape index: {}]
  %s2 = inlined_call_operand.vmem [shape: f32[1,128], index: 2, kind: input, shape index: {}]
  %s3 = inlined_call_operand.vmem [shape: bf16[16,128], index: 3, kind: input, shape index: {}]
  %s4 = inlined_call_operand.vmem [shape: f32[1,128], index: 4, kind: input, shape index: {}]
  %s5 = inlined_call_operand.vmem [shape: f32[1,128], index: 5, kind: input, shape index: {}]
  %s6 = inlined_call_operand.vmem [shape: bf16[16,128], index: 6, kind: output, shape index: {}]
  %s7 = sld [smem:[#allocation0]]
  $region34: #{bert_classifier_forward.16} parent=0
    _
  %s9 = ssub.s32 1, %s7
  %s10 = scalar_select 0, %s9, %s7
  // Predicated region
  $region2: #{bert_classifier_forward.16} parent=0 // pred_check
    _
  $region3: #{bert_classifier_forward.16} parent=0 // pred_check_branch
    %12 = sbr.rel (0) target = $region5
  $region4: #{bert_classifier_forward.16} parent=0 // pred_region
    _
  $region5: #{bert_classifier_forward.16} parent=0 // pred_fallthru
    _
  // Predicated region
  $region6: #{bert_classifier_forward.16} parent=0 // pred_check
    _
  $region7: #{bert_classifier_forward.16} parent=0 // pred_check_branch
    %14 = sbr.rel (0) target = $region9
  $region8: #{bert_classifier_forward.16} parent=0 // pred_region
    _
  $region9: #{bert_classifier_forward.16} parent=0 // pred_fallthru
    _
  // Predicated region
  $region10: #{bert_classifier_forward.16} parent=0 // pred_check
    _
  $region11: #{bert_classifier_forward.16} parent=0 // pred_check_branch
    %16 = sbr.rel (0) target = $region13
  $region12: #{bert_classifier_forward.16} parent=0 // pred_region
    _
  $region13: #{bert_classifier_forward.16} parent=0 // pred_fallthru
    _
  // Predicated region
  $region14: #{bert_classifier_forward.16} parent=0 // pred_check
    _
  $region15: #{bert_classifier_forward.16} parent=0 // pred_check_branch
    %18 = sbr.rel (0) target = $region17
  $region16: #{bert_classifier_forward.16} parent=0 // pred_region
    _
  $region17: #{bert_classifier_forward.16} parent=0 // pred_fallthru
    _
  // Predicated region
  $region18: #{bert_classifier_forward.16} parent=0 // pred_check
    _
  $region19: #{bert_classifier_forward.16} parent=0 // pred_check_branch
    %20 = sbr.rel (0) target = $region21
  $region20: #{bert_classifier_forward.16} parent=0 // pred_region
    _
  $region21: #{bert_classifier_forward.16} parent=0 // pred_fallthru
    _
  // Predicated region
  $region22: #{bert_classifier_forward.16} parent=0 // pred_check
    _
  $region23: #{bert_classifier_forward.16} parent=0 // pred_check_branch
    %22 = sbr.rel (0) target = $region25
  $region24: #{bert_classifier_forward.16} parent=0 // pred_region
    _
  $region25: #{bert_classifier_forward.16} parent=0 // pred_fallthru
    _
  %v24 = vld [vmem:[%s0] sm:$0xff]
  %v25 = vld [vmem:[%s0 + $0x8] sm:$0xff]
  %v26 = vld [vmem:[%s1] sm:$0xf]
  %v27 = vld [vmem:[%s1 + $0x4] sm:$0xf]
  %v28 = vld [vmem:[%s1 + $0x8] sm:$0xf]
  %v29 = vld [vmem:[%s1 + $0xc] sm:$0xf]
  %v30 = vld [vmem:[%s1 + $0x10] sm:$0xf]
  %v31 = vld [vmem:[%s1 + $0x14] sm:$0xf]
  %v32 = vld [vmem:[%s1 + $0x18] sm:$0xf]
  %v33 = vld [vmem:[%s1 + $0x1c] sm:$0xf]
  %v34 = vld [vmem:[%s1 + $0x20] sm:$0xf]
  %v35 = vld [vmem:[%s1 + $0x24] sm:$0xf]
  %v36 = vld [vmem:[%s1 + $0x28] sm:$0xf]
  %v37 = vld [vmem:[%s1 + $0x2c] sm:$0xf]
  %v38 = vld [vmem:[%s1 + $0x30] sm:$0xf]
  %v39 = vld [vmem:[%s1 + $0x34] sm:$0xf]
  %v40 = vld [vmem:[%s1 + $0x38] sm:$0xf]
  %v41 = vld [vmem:[%s1 + $0x3c] sm:$0xf]
  %v42 = vld [vmem:[%s1 + $0x40] sm:$0xf]
  %v43 = vld [vmem:[%s1 + $0x44] sm:$0xf]
  %v44 = vld [vmem:[%s1 + $0x48] sm:$0xf]
  %v45 = vld [vmem:[%s1 + $0x4c] sm:$0xf]
  %v46 = vld [vmem:[%s1 + $0x50] sm:$0xf]
  %v47 = vld [vmem:[%s1 + $0x54] sm:$0xf]
  %v48 = vld [vmem:[%s1 + $0x58] sm:$0xf]
  %v49 = vld [vmem:[%s1 + $0x5c] sm:$0xf]
  %v50 = vld [vmem:[%s1 + $0x60] sm:$0xf]
  %v51 = vld [vmem:[%s1 + $0x64] sm:$0xf]
  %v52 = vld [vmem:[%s1 + $0x68] sm:$0xf]
  %v53 = vld [vmem:[%s1 + $0x6c] sm:$0xf]
  %v54 = vld [vmem:[%s1 + $0x70] sm:$0xf]
  %v55 = vld [vmem:[%s1 + $0x74] sm:$0xf]
  %v56 = vld [vmem:[%s1 + $0x78] sm:$0xf]
  %v57 = vld [vmem:[%s1 + $0x7c] sm:$0xf]
  %v58 = vld [vmem:[%s2] sm:$0x1]
  %v60 = vlaneseq
  %v61 = vshrl.u32 %v60, 7
  %v62 = vsub.s32 0, %v61
  %v63 = vrot.slane %v58, %v62
  %v67 = vunpack.c.l.b16 %v24
  %v68 = vunpack.c.h.b16 %v24
  %v69 = vunpack.c.l.b16 %v25
  %v70 = vunpack.c.h.b16 %v25
  %v71 = vpack.c.b16 %v69, %v67
  %v72 = vpack.c.b16 %v70, %v68
  %v107 = vunpack.c.l.b16 %v26
  %v108 = vunpack.c.l.b16 %v27
  %v109 = vunpack.c.l.b16 %v28
  %v110 = vunpack.c.l.b16 %v29
  %v111 = vunpack.c.l.b16 %v30
  %v112 = vunpack.c.l.b16 %v31
  %v113 = vunpack.c.l.b16 %v32
  %v114 = vunpack.c.l.b16 %v33
  %v115 = vunpack.c.l.b16 %v34
  %v116 = vunpack.c.l.b16 %v35
  %v117 = vunpack.c.l.b16 %v36
  %v118 = vunpack.c.l.b16 %v37
  %v119 = vunpack.c.l.b16 %v38
  %v120 = vunpack.c.l.b16 %v39
  %v121 = vunpack.c.l.b16 %v40
  %v122 = vunpack.c.l.b16 %v41
  %v123 = vunpack.c.l.b16 %v42
  %v124 = vunpack.c.l.b16 %v43
  %v125 = vunpack.c.l.b16 %v44
  %v126 = vunpack.c.l.b16 %v45
  %v127 = vunpack.c.l.b16 %v46
  %v128 = vunpack.c.l.b16 %v47
  %v129 = vunpack.c.l.b16 %v48
  %v130 = vunpack.c.l.b16 %v49
  %v131 = vunpack.c.l.b16 %v50
  %v132 = vunpack.c.l.b16 %v51
  %v133 = vunpack.c.l.b16 %v52
  %v134 = vunpack.c.l.b16 %v53
  %v135 = vunpack.c.l.b16 %v54
  %v136 = vunpack.c.l.b16 %v55
  %v137 = vunpack.c.l.b16 %v56
  %v138 = vunpack.c.l.b16 %v57
  %v139 = vpack.c.b16 %v108, %v107
  %v140 = vpack.c.b16 %v110, %v109
  %v141 = vpack.c.b16 %v112, %v111
  %v142 = vpack.c.b16 %v114, %v113
  %v143 = vpack.c.b16 %v116, %v115
  %v144 = vpack.c.b16 %v118, %v117
  %v145 = vpack.c.b16 %v120, %v119
  %v146 = vpack.c.b16 %v122, %v121
  %v147 = vpack.c.b16 %v124, %v123
  %v148 = vpack.c.b16 %v126, %v125
  %v149 = vpack.c.b16 %v128, %v127
  %v150 = vpack.c.b16 %v130, %v129
  %v151 = vpack.c.b16 %v132, %v131
  %v152 = vpack.c.b16 %v134, %v133
  %v153 = vpack.c.b16 %v136, %v135
  %v154 = vpack.c.b16 %v138, %v137
  %171 = vmatprep.subr.bf16.mxu0 0
  %172 = vmatpush1.bf16.msra.mxu0 %v146
  %173 = vmatprep.subr.bf16.mxu0 0
  %174 = vmatpush1.bf16.msra.mxu0 %v145
  %175 = vmatprep.subr.bf16.mxu0 0
  %176 = vmatpush1.bf16.msra.mxu0 %v144
  %177 = vmatprep.subr.bf16.mxu0 0
  %178 = vmatpush1.bf16.msra.mxu0 %v143
  %179 = vmatprep.subr.bf16.mxu0 0
  %180 = vmatpush1.bf16.msra.mxu0 %v142
  %181 = vmatprep.subr.bf16.mxu0 0
  %182 = vmatpush1.bf16.msra.mxu0 %v141
  %183 = vmatprep.subr.bf16.mxu0 0
  %184 = vmatpush1.bf16.msra.mxu0 %v140
  %185 = vmatprep.subr.bf16.mxu0 0
  %186 = vmatpush1.bf16.msra.mxu0 %v139
  %187 = vmatprep.subr.bf16.mxu0 0
  %188 = vmatpush2.bf16.msra.mxu0 %v154
  %189 = vmatprep.subr.bf16.mxu0 0
  %190 = vmatpush2.bf16.msra.mxu0 %v153
  %191 = vmatprep.subr.bf16.mxu0 0
  %192 = vmatpush2.bf16.msra.mxu0 %v152
  %193 = vmatprep.subr.bf16.mxu0 0
  %194 = vmatpush2.bf16.msra.mxu0 %v151
  %195 = vmatprep.subr.bf16.mxu0 0
  %196 = vmatpush2.bf16.msra.mxu0 %v150
  %197 = vmatprep.subr.bf16.mxu0 0
  %198 = vmatpush2.bf16.msra.mxu0 %v149
  %199 = vmatprep.subr.bf16.mxu0 0
  %200 = vmatpush2.bf16.msra.mxu0 %v148
  %201 = vmatprep.subr.bf16.mxu0 0
  %202 = vmatpush2.bf16.msra.mxu0 %v147
  %203 = vmatprep.mubr.bf16.mxu0 %v72
  %204 = vmatmul.mubr.bf16.gmra.mxu0 %v71
  %v205 = vpop.f32.mrf.mxu0
  %v206 = vadd.f32 %v63, %v205
  %v207 = vpop.f32.mrf.mxu0
  %v208 = vpop.f32.mrf.mxu0
  %v209 = vadd.f32 %v63, %v208
  %v210 = vpop.f32.mrf.mxu0
  %211 = vdwg.mxu0
  %v212 = vld [vmem:[%s3] sm:$0xf]
  %v213 = vld [vmem:[%s3 + $0x4] sm:$0xf]
  %v214 = vunpack.c.l.bf16 %v212
  %v215 = vunpack.c.l.bf16 %v213
  %v216 = vadd.f32 %v206, %v214
  %v217 = vadd.f32 %v209, %v215
  %v218 = vld [vmem:[%s4] sm:$0x1]
  %v219 = vld [vmem:[%s5] sm:$0x1]
  %220 = vadd.xlane.f32.xlu0 %v216
  %v221 = vpop.xlane.xlu0 %220
  %222 = vadd.xlane.f32.xlu0 %v217
  %v223 = vpop.xlane.xlu0 %222
  %v224 = vrcp.pop 128.0
  %v225 = vmul.f32 %v221, %v224
  %v226 = vmul.f32 %v223, %v224
  %v227 = vsub.f32 %v216, %v225
  %v228 = vsub.f32 %v217, %v226
  %v229 = vmul.f32 %v227, %v227
  %v230 = vmul.f32 %v228, %v228
  %231 = vadd.xlane.f32.xlu0 %v229
  %v232 = vpop.xlane.xlu0 %231
  %233 = vadd.xlane.f32.xlu0 %v230
  %v234 = vpop.xlane.xlu0 %233
  %v235 = vmul.f32 %v232, %v224
  %v236 = vmul.f32 %v234, %v224
  %v237 = vadd.f32 %v235, 1e-12
  %v238 = vadd.f32 %v236, 1e-12
  %v239 = vrsqrt.pop %v237
  %v240 = vrsqrt.pop %v238
  %v241 = vmul.f32 %v227, %v239
  %v242 = vmul.f32 %v228, %v240
  %v244 = vlaneseq
  %v245 = vshrl.u32 %v244, 7
  %v246 = vsub.s32 0, %v245
  %v247 = vrot.slane %v218, %v246
  %v249 = vmul.f32 %v241, %v247
  %v250 = vmul.f32 %v242, %v247
  %v252 = vlaneseq
  %v253 = vshrl.u32 %v252, 7
  %v254 = vsub.s32 0, %v253
  %v255 = vrot.slane %v219, %v254
  %v257 = vadd.f32 %v249, %v255
  %v258 = vadd.f32 %v250, %v255
  %v259 = vpack.c.bf16 %v258, %v257
  %v261 = vunpack.c.l.b16 %v259
  %v262 = vunpack.c.h.b16 %v259
  %v263 = vpack.c.b16 %v261, %v261
  %v264 = vpack.c.b16 %v262, %v262
  %267 = vst [vmem:[%s6] sm:$0xf] %v263
  %268 = vst [vmem:[%s6 + $0x4] sm:$0xf] %v264
  // Predicated region
  $region26: #{bert_classifier_forward.16} parent=0 // pred_check
    _
  $region27: #{bert_classifier_forward.16} parent=0 // pred_check_branch
    %270 = sbr.rel (0) target = $region29
  $region28: #{bert_classifier_forward.16} parent=0 // pred_region
    _
  $region29: #{bert_classifier_forward.16} parent=0 // pred_fallthru
    _
  // Predicated region
  $region30: #{bert_classifier_forward.16} parent=0 // pred_check
    _
  $region31: #{bert_classifier_forward.16} parent=0 // pred_check_branch
    %272 = sbr.rel (0) target = $region33
  $region32: #{bert_classifier_forward.16} parent=0 // pred_region
    _
  $region33: #{bert_classifier_forward.16} parent=0 // pred_fallthru
    _

</llo_original>
